<compile_context>
chip_gen: v7x
topology: tpu7x:2x2x1
jax: 0.10.0
libtpu: 0.0.40
codegen_flags: <defaults>
</compile_context>

<pallas_src>
import functools

import jax
import jax.numpy as jnp
from jax import lax
from jax.experimental import pallas as pl
from jax.experimental.pallas import tpu as pltpu

BN_EPS = 1e-5
HEAD_PAD = 128     # lane-dense padded width of the fused rot|trans output slab
QUAT_DIM = 4
TRANS_DIM = 3


# --------------------------------------------------------------------------
# shared finalize: 3x (Linear -> BN -> ReLU) -> fused rot|trans head
# --------------------------------------------------------------------------
def _mlp_heads(feat, w1_ref, gb1_ref, w2_ref, gb2_ref, w3_ref, gb3_ref,
               wh_ref, bh_ref, *, mm_dtype, fold_bn):
    """feat: (B, E) f32 max-pooled embedding -> (B, HEAD_PAD) f32 slab.

    Linear biases are omitted: with training-mode BN the batch-mean
    subtraction cancels them exactly; with fold_bn=True they are folded into
    the per-channel shift on the host (eval-mode BN)."""
    def layer(h, w_ref, gb_ref):
        h = jnp.dot(h.astype(mm_dtype), w_ref[...].astype(mm_dtype),
                    preferred_element_type=jnp.float32)
        gb = gb_ref[...]                       # (2, C) f32: [scale; shift]
        if not fold_bn:                        # training-mode BN (batch stats)
            mean = jnp.mean(h, axis=0, keepdims=True)
            var = jnp.mean(jnp.square(h - mean), axis=0, keepdims=True)
            h = (h - mean) * lax.rsqrt(var + BN_EPS)
        return jnp.maximum(h * gb[0:1, :] + gb[1:2, :], 0.0)

    h = layer(feat, w1_ref, gb1_ref)           # (B, E//2)
    h = layer(h, w2_ref, gb2_ref)              # (B, E//4)
    h = layer(h, w3_ref, gb3_ref)              # (B, E//8)

    # one lane-dense matmul for rot|trans|padding
    out = jnp.dot(h.astype(mm_dtype), wh_ref[...].astype(mm_dtype),
                  preferred_element_type=jnp.float32) + bh_ref[...]   # (B,128)

    # quaternion L2-normalize columns [0,4) of the padded slab
    col = lax.broadcasted_iota(jnp.int32, out.shape, 1)
    is_rot = col < QUAT_DIM
    sq = jnp.sum(jnp.where(is_rot, out * out, 0.0), axis=1, keepdims=True)
    inv = lax.rsqrt(jnp.maximum(sq, 1e-12))
    return jnp.where(is_rot, out * inv, out)


# --------------------------------------------------------------------------
# fused single-kernel path (default): streaming max-reduce + finalize
# --------------------------------------------------------------------------
def fused_generator_kernel(
    x_ref,                               # (B, block_n, E) one N-tile of x
    w1_ref, gb1_ref, w2_ref, gb2_ref, w3_ref, gb3_ref, wh_ref, bh_ref,
    out_ref,                             # (B, 128) padded output (resident)
    feat_ref,                            # (B, E) f32 scratch: running max
    *, block_n, n_total, mm_dtype, fold_bn,
):
    n = pl.program_id(0)
    n_blocks = pl.num_programs(0)

    @pl.when(n == 0)
    def _init():
        feat_ref[...] = jnp.full(feat_ref.shape, -jnp.inf, feat_ref.dtype)

    def tile_max(mask_tail):
        x = x_ref[...].astype(jnp.float32)                  # (B, tn, E)
        if mask_tail:
            # mask the padded tail rows of the final tile with -inf
            row = lax.broadcasted_iota(jnp.int32, (block_n, 1), 0)
            valid = (n * block_n + row) < n_total           # (tn, 1)
            x = jnp.where(valid[None, :, :], x, -jnp.inf)
        feat_ref[...] = jnp.maximum(feat_ref[...], jnp.max(x, axis=1))

    if n_total % block_n != 0:
        # masking only ever matters on the last tile -> gate it there
        @pl.when(n == n_blocks - 1)
        def _masked():
            tile_max(True)

        @pl.when(n != n_blocks - 1)
        def _unmasked():
            tile_max(False)
    else:
        tile_max(False)

    @pl.when(n == n_blocks - 1)
    def _finalize():
        out_ref[...] = _mlp_heads(
            feat_ref[...], w1_ref, gb1_ref, w2_ref, gb2_ref, w3_ref, gb3_ref,
            wh_ref, bh_ref, mm_dtype=mm_dtype, fold_bn=fold_bn)


# --------------------------------------------------------------------------
# split-reduce path (v7x megacore): per-core partial max + tiny head kernel
# --------------------------------------------------------------------------
def reduce_max_kernel(x_ref, pmax_ref, *, block_n, n_total, tiles_per_core,
                      n_valid_blocks, num_cores):
    c = pl.program_id(0)                 # core slice ("parallel" axis)
    n = pl.program_id(1)                 # tile within this core's chunk

    @pl.when(n == 0)
    def _init():
        pmax_ref[...] = jnp.full(pmax_ref.shape, -jnp.inf, pmax_ref.dtype)

    start = (c * tiles_per_core + n) * block_n     # global start row (may overrun)

    def tile_max(mask_tail):
        x = x_ref[...].astype(jnp.float32)                  # (B, tn, E)
        if mask_tail:
            row = lax.broadcasted_iota(jnp.int32, (block_n, 1), 0)
            valid = (start + row) < n_total
            x = jnp.where(valid[None, :, :], x, -jnp.inf)
        pmax_ref[...] = jnp.maximum(pmax_ref[...],
                                    jnp.max(x, axis=1)[None, :, :])

    if n_total % block_n == 0 and num_cores * tiles_per_core == n_valid_blocks:
        tile_max(False)                  # statically no padding anywhere
    else:
        needs_mask = (start + block_n) > n_total

        @pl.when(needs_mask)
        def _masked():
            tile_max(True)

        @pl.when(jnp.logical_not(needs_mask))
        def _unmasked():
            tile_max(False)


def head_kernel(pmax_ref, w1_ref, gb1_ref, w2_ref, gb2_ref, w3_ref, gb3_ref,
                wh_ref, bh_ref, out_ref, *, mm_dtype, fold_bn):
    feat = jnp.max(pmax_ref[...], axis=0)                   # combine cores
    out_ref[...] = _mlp_heads(
        feat, w1_ref, gb1_ref, w2_ref, gb2_ref, w3_ref, gb3_ref,
        wh_ref, bh_ref, mm_dtype=mm_dtype, fold_bn=fold_bn)


# --------------------------------------------------------------------------
# host-side helpers (run once per parameter set / per shape, not per call)
# --------------------------------------------------------------------------
def _vmem_capacity_bytes():
    """Per-TensorCore VMEM capacity; falls back to the v7x worst case."""
    default = 64 * 1024 * 1024
    try:
        info_fn = getattr(pltpu, "get_tpu_info", None)
        if info_fn is None:
            return default
        cap = getattr(info_fn(), "vmem_capacity_bytes", None)
        return int(cap) if cap else default
    except Exception:
        return default


def _vmem_limit_bytes(need_bytes, capacity):
    """Scoped-VMEM limit derived from actual buffer sizes + headroom."""
    need = int(need_bytes * 1.25) + (2 << 20)     # compiler-internal headroom
    lo = 16 << 20
    hi = max(lo, capacity - (8 << 20))
    return max(lo, min(need, hi))


def _choose_block_n(B, N, E, elt_bytes, budget_bytes):
    """Pick block_n by tile BYTES (~8 MiB target, ~85% of HBM roofline),
    capped so the double-buffered x tile stays well inside the VMEM budget."""
    row_bytes = max(1, B * E * elt_bytes)
    target = 8 << 20
    cap = max(1 << 19, int(0.6 * budget_bytes) // 2)   # /2: double buffered
    tile_bytes = min(target, cap)
    rows = max(8, tile_bytes // row_bytes)
    if rows >= N:
        return N
    return max(8, int(rows) // 8 * 8)


def pack_params(params, *, param_dtype=jnp.bfloat16, fold_bn=False,
                bn_eps=BN_EPS):
    """Pack/pad parameters ONCE on the host (feedback: hoist out of forward).

    * gamma/beta (or folded eval-BN scale/shift) -> one (2, C) f32 slab/layer.
    * rot (d3,4) and trans (d3,3) heads -> one lane-dense (d3, 128) matmul.
    * matmul weights stored in `param_dtype` (bf16 default; MXU-native)."""
    def gb_slab(i):
        g, be, b = params[f"g{i}"], params[f"be{i}"], params[f"b{i}"]
        if fold_bn:
            # eval-mode BN + Linear bias folded into per-channel scale/shift
            s = g / jnp.sqrt(params[f"rv{i}"] + bn_eps)
            t = (b - params[f"rm{i}"]) * s + be
            return jnp.concatenate([s, t], axis=0).astype(jnp.float32)
        # training-mode BN: the Linear bias is cancelled by the batch-mean
        # subtraction, so only gamma/beta are needed.
        return jnp.concatenate([g, be], axis=0).astype(jnp.float32)

    d3 = params["w3"].shape[1]
    wh = jnp.zeros((d3, HEAD_PAD), jnp.float32)
    wh = wh.at[:, :QUAT_DIM].set(params["wr"])
    wh = wh.at[:, QUAT_DIM:QUAT_DIM + TRANS_DIM].set(params["wt"])
    bh = jnp.zeros((1, HEAD_PAD), jnp.float32)
    bh = bh.at[:, :QUAT_DIM].set(params["br"])
    bh = bh.at[:, QUAT_DIM:QUAT_DIM + TRANS_DIM].set(params["bt"])

    return {
        "w1": params["w1"].astype(param_dtype), "gb1": gb_slab(1),
        "w2": params["w2"].astype(param_dtype), "gb2": gb_slab(2),
        "w3": params["w3"].astype(param_dtype), "gb3": gb_slab(3),
        "wh": wh.astype(param_dtype), "bh": bh,
    }


# --------------------------------------------------------------------------
# forward wrapper
# --------------------------------------------------------------------------
def generator_forward(x, packed, *, block_n=None, num_cores=1,
                      mm_dtype=jnp.bfloat16, fold_bn=False):
    """x: (B, N, E) embeddings (stream in bf16 for the perf path).
    packed: output of pack_params (must match fold_bn).
    num_cores=2 enables the v7x two-TensorCore split of the max-reduce."""
    B, N, E = x.shape
    if num_cores < 1:
        raise ValueError("num_cores must be >= 1")
    elt = jnp.dtype(x.dtype).itemsize

    capacity = _vmem_capacity_bytes()
    budget = max(24 << 20, capacity - (16 << 20))

    if block_n is None:
        block_n = _choose_block_n(B, N, E, elt, budget)
    block_n = int(min(block_n, N))
    if block_n != N and block_n % 8 != 0:
        raise ValueError("block_n must be a multiple of 8 (sublane) or equal N")

    weight_args = (packed["w1"], packed["gb1"], packed["w2"], packed["gb2"],
                   packed["w3"], packed["gb3"], packed["wh"], packed["bh"])
    weight_bytes = sum(int(w.size) * w.dtype.itemsize for w in weight_args)
    x_tile_bytes = B * block_n * E * elt
    out_bytes = B * HEAD_PAD * 4

    def resident(shape):   # constant index_map -> stays resident across grid
        return pl.BlockSpec(shape, lambda i: (0,) * len(shape))
    # (pl.Buffered(1) on these would reclaim the duplicate buffer on v7x at
    #  very large emb_dims; omitted here for portability.)

    if num_cores == 1:
        # -------- fused single-launch kernel --------------------------------
        n_blocks = pl.cdiv(N, block_n)
        need = 2 * x_tile_bytes + 2 * weight_bytes + B * E * 4 + 2 * out_bytes
        out_padded = pl.pallas_call(
            functools.partial(fused_generator_kernel, block_n=block_n,
                              n_total=N, mm_dtype=mm_dtype, fold_bn=fold_bn),
            out_shape=jax.ShapeDtypeStruct((B, HEAD_PAD), jnp.float32),
            grid_spec=pltpu.PrefetchScalarGridSpec(
                num_scalar_prefetch=0,
                grid=(n_blocks,),
                in_specs=[pl.BlockSpec((B, block_n, E), lambda n: (0, n, 0))]
                         + [resident(tuple(w.shape)) for w in weight_args],
                out_specs=pl.BlockSpec((B, HEAD_PAD), lambda n: (0, 0)),
                scratch_shapes=[pltpu.VMEM((B, E), jnp.float32)],
            ),
            compiler_params=pltpu.CompilerParams(
                dimension_semantics=("arbitrary",),       # N is the reduction
                vmem_limit_bytes=_vmem_limit_bytes(need, capacity)),
        )(x, *weight_args)
    else:
        # -------- split reduce (parallel core axis) + tiny head kernel ------
        n_valid_blocks = pl.cdiv(N, block_n)
        tpc = pl.cdiv(n_valid_blocks, num_cores)

        def x_index(c, n):
            # clamp so over-run tiles of the last core DMA a valid block;
            # their contribution is fully masked to -inf inside the kernel.
            return (0, jnp.minimum(c * tpc + n, n_valid_blocks - 1), 0)

        need_r = 2 * x_tile_bytes + 2 * (B * E * 4)
        partial_max = pl.pallas_call(
            functools.partial(reduce_max_kernel, block_n=block_n, n_total=N,
                              tiles_per_core=tpc, n_valid_blocks=n_valid_blocks,
                              num_cores=num_cores),
            out_shape=jax.ShapeDtypeStruct((num_cores, B, E), jnp.float32),
            grid_spec=pltpu.PrefetchScalarGridSpec(
                num_scalar_prefetch=0,
                grid=(num_cores, tpc),
                in_specs=[pl.BlockSpec((B, block_n, E), x_index)],
                out_specs=pl.BlockSpec((1, B, E), lambda c, n: (c, 0, 0)),
            ),
            compiler_params=pltpu.CompilerParams(
                dimension_semantics=("parallel", "arbitrary"),
                vmem_limit_bytes=_vmem_limit_bytes(need_r, capacity)),
        )(x)

        need_h = 2 * (num_cores * B * E * 4) + 2 * weight_bytes + 2 * out_bytes
        out_padded = pl.pallas_call(
            functools.partial(head_kernel, mm_dtype=mm_dtype, fold_bn=fold_bn),
            out_shape=jax.ShapeDtypeStruct((B, HEAD_PAD), jnp.float32),
            grid_spec=pltpu.PrefetchScalarGridSpec(
                num_scalar_prefetch=0,
                grid=(1,),
                in_specs=[resident((num_cores, B, E))]
                         + [resident(tuple(w.shape)) for w in weight_args],
                out_specs=pl.BlockSpec((B, HEAD_PAD), lambda i: (0, 0)),
            ),
            compiler_params=pltpu.CompilerParams(
                dimension_semantics=("arbitrary",),
                vmem_limit_bytes=_vmem_limit_bytes(need_h, capacity)),
        )(partial_max, *weight_args)

    rot = out_padded[:, :QUAT_DIM]
    trans = out_padded[:, QUAT_DIM:QUAT_DIM + TRANS_DIM]
    return rot, trans


# --------------------------------------------------------------------------
# pure-JAX reference (original module formulation, with matching quantization
# points so the comparison against the kernel is apples-to-apples)
# --------------------------------------------------------------------------
def generator_reference(x, params, *, stream_dtype=jnp.float32,
                        param_dtype=jnp.float32, mm_dtype=jnp.float32,
                        eval_bn=False):
    xq = x.astype(stream_dtype).astype(jnp.float32)
    feat = jnp.max(xq, axis=1)

    def layer(h, i):
        w = params[f"w{i}"].astype(param_dtype)
        hb = jnp.dot(h.astype(mm_dtype), w.astype(mm_dtype),
                     preferred_element_type=jnp.float32) + params[f"b{i}"]
        if eval_bn:
            m, v = params[f"rm{i}"], params[f"rv{i}"]
        else:
            m = jnp.mean(hb, axis=0, keepdims=True)
            v = jnp.mean(jnp.square(hb - m), axis=0, keepdims=True)
        return jnp.maximum((hb - m) / jnp.sqrt(v + BN_EPS) * params[f"g{i}"]
                           + params[f"be{i}"], 0.0)

    h = layer(feat, 1)
    h = layer(h, 2)
    h = layer(h, 3)
    wr = params["wr"].astype(param_dtype)
    wt = params["wt"].astype(param_dtype)
    rot = jnp.dot(h.astype(mm_dtype), wr.astype(mm_dtype),
                  preferred_element_type=jnp.float32) + params["br"]
    trans = jnp.dot(h.astype(mm_dtype), wt.astype(mm_dtype),
                    preferred_element_type=jnp.float32) + params["bt"]
    rot = rot / jnp.linalg.norm(rot, axis=1, keepdims=True)
    return rot, trans


def init_params(key, emb_dims):
    """Deterministic synthetic parameters (PyTorch-style fan-in scaling),
    including running stats so the folded eval-mode BN path can be tested."""
    d0, d1, d2, d3 = emb_dims, emb_dims // 2, emb_dims // 4, emb_dims // 8

    def linear(k, din, dout):
        kw, kb = jax.random.split(k)
        bound = 1.0 / jnp.sqrt(din)
        w = jax.random.uniform(kw, (din, dout), jnp.float32, -bound, bound)
        b = jax.random.uniform(kb, (1, dout), jnp.float32, -bound, bound)
        return w, b

    def bn(k, c):
        k1, k2, k3, k4 = jax.random.split(k, 4)
        return {
            "g": 1.0 + 0.1 * jax.random.normal(k1, (1, c), jnp.float32),
            "be": 0.1 * jax.random.normal(k2, (1, c), jnp.float32),
            "rm": 0.1 * jax.random.normal(k3, (1, c), jnp.float32),
            "rv": jax.random.uniform(k4, (1, c), jnp.float32, 0.5, 1.5),
        }

    keys = jax.random.split(key, 8)
    w1, b1 = linear(keys[0], d0, d1)
    w2, b2 = linear(keys[1], d1, d2)
    w3, b3 = linear(keys[2], d2, d3)
    wr, br = linear(keys[3], d3, QUAT_DIM)
    wt, bt = linear(keys[4], d3, TRANS_DIM)

    p = {"w1": w1, "b1": b1, "w2": w2, "b2": b2, "w3": w3, "b3": b3,
         "wr": wr, "br": br, "wt": wt, "bt": bt}
    for i, bn_p in ((1, bn(keys[5], d1)), (2, bn(keys[6], d2)),
                    (3, bn(keys[7], d3))):
        for name, val in bn_p.items():
            p[f"{name}{i}"] = val
    return p


if __name__ == "__main__":
    B, N, EMB = 8, 20, 64      # N=20 with block_n=8 exercises the masked tail

    key = jax.random.PRNGKey(0)
    kx, kp = jax.random.split(key)
    x = jax.random.normal(kx, (B, N, EMB), jnp.float32)
    params = init_params(kp, EMB)

    def check(got, want, tol):
        rot_g, tr_g = got
        rot_w, tr_w = want
        assert rot_g.shape == (B, QUAT_DIM) and tr_g.shape == (B, TRANS_DIM)
        assert jnp.allclose(rot_g, rot_w, atol=tol, rtol=tol)
        assert jnp.allclose(tr_g, tr_w, atol=tol, rtol=tol)
        assert jnp.allclose(jnp.linalg.norm(rot_g, axis=1), 1.0, atol=1e-4)

    # 1) strict f32 check: fused single-kernel path, training-mode BN,
    #    3 N-tiles incl. masked tail (exercises init / running-max / finalize).
    packed_f32 = pack_params(params, param_dtype=jnp.float32, fold_bn=False)
    out1 = generator_forward(x, packed_f32, block_n=8, num_cores=1,
                             mm_dtype=jnp.float32, fold_bn=False)
    out1 = jax.block_until_ready(out1)
    ref = generator_reference(x, params)
    check(out1, ref, 1e-4)

    # 2) strict f32 check: split-reduce path (v7x two-TensorCore layout);
    #    also exercises the clamped fully-out-of-range tile on the last core.
    out2 = generator_forward(x, packed_f32, block_n=8, num_cores=2,
                             mm_dtype=jnp.float32, fold_bn=False)
    out2 = jax.block_until_ready(out2)
    check(out2, ref, 1e-4)

    # 3) strict f32 check: folded eval-mode BN (inference deployment path).
    packed_eval = pack_params(params, param_dtype=jnp.float32, fold_bn=True)
    out3 = generator_forward(x, packed_eval, block_n=8, num_cores=1,
                             mm_dtype=jnp.float32, fold_bn=True)
    out3 = jax.block_until_ready(out3)
    ref_eval = generator_reference(x, params, eval_bn=True)
    check(out3, ref_eval, 1e-4)

    # 4) performance defaults: bf16-streamed x, bf16 weights, bf16 MXU operands
    #    (f32 accumulation / BN stats); compared against a dtype-matched ref.
    packed_bf16 = pack_params(params)              # param_dtype = bf16
    x_bf16 = x.astype(jnp.bfloat16)                # half the streamed HBM bytes
    out4 = generator_forward(x_bf16, packed_bf16, block_n=8)   # mm_dtype = bf16
    out4 = jax.block_until_ready(out4)
    ref_bf16 = generator_reference(x, params, stream_dtype=jnp.bfloat16,
                                   param_dtype=jnp.bfloat16,
                                   mm_dtype=jnp.bfloat16)
    check(out4, ref_bf16, 5e-3)

    print("KERNEL_OK")
</pallas_src>

<mosaic_0001>
module attributes {stable_mosaic.version = 11 : i64} {
  func.func @fused_generator_kernel(%arg0: i32, %arg1: memref<8x8x64xf32, #tpu.memory_space<vmem>>, %arg2: memref<64x32xf32, #tpu.memory_space<vmem>>, %arg3: memref<2x32xf32, #tpu.memory_space<vmem>>, %arg4: memref<32x16xf32, #tpu.memory_space<vmem>>, %arg5: memref<2x16xf32, #tpu.memory_space<vmem>>, %arg6: memref<16x8xf32, #tpu.memory_space<vmem>>, %arg7: memref<2x8xf32, #tpu.memory_space<vmem>>, %arg8: memref<8x128xf32, #tpu.memory_space<vmem>>, %arg9: memref<1x128xf32, #tpu.memory_space<vmem>>, %arg10: memref<8x128xf32, #tpu.memory_space<vmem>>, %arg11: memref<8x64xf32, #tpu.memory_space<vmem>>) attributes {dimension_semantics = [#tpu.dimension_semantics<arbitrary>], iteration_bounds = array<i64: 3>, scalar_prefetch = 0 : i64, scratch_operands = 1 : i64, tpu.core_type = #tpu.core_type<tc>, window_params = [{transform_indices = @transform_0, window_bounds = array<i64: 8, 8, 64>}, {pipeline_mode = #tpu.pipeline_mode<synchronous>, transform_indices = @transform_1, window_bounds = array<i64: 64, 32>}, {pipeline_mode = #tpu.pipeline_mode<synchronous>, transform_indices = @transform_2, window_bounds = array<i64: 2, 32>}, {pipeline_mode = #tpu.pipeline_mode<synchronous>, transform_indices = @transform_3, window_bounds = array<i64: 32, 16>}, {pipeline_mode = #tpu.pipeline_mode<synchronous>, transform_indices = @transform_4, window_bounds = array<i64: 2, 16>}, {pipeline_mode = #tpu.pipeline_mode<synchronous>, transform_indices = @transform_5, window_bounds = array<i64: 16, 8>}, {pipeline_mode = #tpu.pipeline_mode<synchronous>, transform_indices = @transform_6, window_bounds = array<i64: 2, 8>}, {pipeline_mode = #tpu.pipeline_mode<synchronous>, transform_indices = @transform_7, window_bounds = array<i64: 8, 128>}, {pipeline_mode = #tpu.pipeline_mode<synchronous>, transform_indices = @transform_8, window_bounds = array<i64: 1, 128>}, {pipeline_mode = #tpu.pipeline_mode<synchronous>, transform_indices = @transform_9, window_bounds = array<i64: 8, 128>}]} {
    %c0_i32 = arith.constant 0 : i32
    %0 = arith.cmpi eq, %arg0, %c0_i32 : i32
    %1 = arith.extui %0 : i1 to i32
    %c0_i32_0 = arith.constant 0 : i32
    %2 = arith.cmpi ne, %1, %c0_i32_0 : i32
    scf.if %2 {
      %cst = arith.constant 0xFF800000 : f32
      %12 = vector.broadcast %cst : f32 to vector<8x64xf32>
      %c0 = arith.constant 0 : index
      %c0_6 = arith.constant 0 : index
      %13 = vector.load %arg11[%c0, %c0_6] : memref<8x64xf32, #tpu.memory_space<vmem>>, vector<8x64xf32>
      tpu.vector_store %arg11[%c0, %c0_6], %12 {strides = array<i32>} : memref<8x64xf32, #tpu.memory_space<vmem>>, vector<8x64xf32>,
    } else {
    }
    %c2_i32 = arith.constant 2 : i32
    %3 = arith.cmpi eq, %arg0, %c2_i32 : i32
    %4 = arith.extui %3 : i1 to i32
    %c0_i32_1 = arith.constant 0 : i32
    %5 = arith.cmpi ne, %4, %c0_i32_1 : i32
    scf.if %5 {
      %c0 = arith.constant 0 : index
      %c0_6 = arith.constant 0 : index
      %c0_7 = arith.constant 0 : index
      %12 = vector.load %arg1[%c0, %c0_6, %c0_7] : memref<8x8x64xf32, #tpu.memory_space<vmem>>, vector<8x8x64xf32>
      %13 = tpu.iota {dimensions = array<i32: 0>} : vector<8x1xi32>
      %c8_i32 = arith.constant 8 : i32
      %14 = arith.muli %arg0, %c8_i32 : i32
      %15 = vector.broadcast %14 : i32 to vector<8x1xi32>
      %16 = arith.addi %15, %13 : vector<8x1xi32>
      %c20_i32 = arith.constant 20 : i32
      %17 = vector.broadcast %c20_i32 : i32 to vector<8x1xi32>
      %18 = arith.cmpi slt, %16, %17 : vector<8x1xi32>
      %19 = vector.shape_cast %18 : vector<8x1xi1> to vector<1x8x1xi1>
      %cst = arith.constant 0xFF800000 : f32
      %20 = vector.shape_cast %19 : vector<1x8x1xi1> to vector<1x8x1xi1>
      %21 = vector.broadcast %20 : vector<1x8x1xi1> to vector<8x8x64xi1>
      %22 = vector.broadcast %cst : f32 to vector<8x8x64xf32>
      %23 = arith.select %21, %12, %22 : vector<8x8x64xi1>, vector<8x8x64xf32>
      %c0_8 = arith.constant 0 : index
      %c0_9 = arith.constant 0 : index
      %24 = vector.load %arg11[%c0_8, %c0_9] : memref<8x64xf32, #tpu.memory_space<vmem>>, vector<8x64xf32>
      %cst_10 = arith.constant dense<0xFF800000> : vector<8x64xf32>
      %25 = vector.multi_reduction <maximumf>, %23, %cst_10 [1] : vector<8x8x64xf32> to vector<8x64xf32>
      %26 = arith.maximumf %24, %25 : vector<8x64xf32>
      %c0_11 = arith.constant 0 : index
      %c0_12 = arith.constant 0 : index
      %27 = vector.load %arg11[%c0_11, %c0_12] : memref<8x64xf32, #tpu.memory_space<vmem>>, vector<8x64xf32>
      tpu.vector_store %arg11[%c0_11, %c0_12], %26 {strides = array<i32>} : memref<8x64xf32, #tpu.memory_space<vmem>>, vector<8x64xf32>,
    } else {
    }
    %c2_i32_2 = arith.constant 2 : i32
    %6 = arith.cmpi ne, %arg0, %c2_i32_2 : i32
    %7 = arith.extui %6 : i1 to i32
    %c0_i32_3 = arith.constant 0 : i32
    %8 = arith.cmpi ne, %7, %c0_i32_3 : i32
    scf.if %8 {
      %c0 = arith.constant 0 : index
      %c0_6 = arith.constant 0 : index
      %c0_7 = arith.constant 0 : index
      %12 = vector.load %arg1[%c0, %c0_6, %c0_7] : memref<8x8x64xf32, #tpu.memory_space<vmem>>, vector<8x8x64xf32>
      %c0_8 = arith.constant 0 : index
      %c0_9 = arith.constant 0 : index
      %13 = vector.load %arg11[%c0_8, %c0_9] : memref<8x64xf32, #tpu.memory_space<vmem>>, vector<8x64xf32>
      %cst = arith.constant dense<0xFF800000> : vector<8x64xf32>
      %14 = vector.multi_reduction <maximumf>, %12, %cst [1] : vector<8x8x64xf32> to vector<8x64xf32>
      %15 = arith.maximumf %13, %14 : vector<8x64xf32>
      %c0_10 = arith.constant 0 : index
      %c0_11 = arith.constant 0 : index
      %16 = vector.load %arg11[%c0_10, %c0_11] : memref<8x64xf32, #tpu.memory_space<vmem>>, vector<8x64xf32>
      tpu.vector_store %arg11[%c0_10, %c0_11], %15 {strides = array<i32>} : memref<8x64xf32, #tpu.memory_space<vmem>>, vector<8x64xf32>,
    } else {
    }
    %c2_i32_4 = arith.constant 2 : i32
    %9 = arith.cmpi eq, %arg0, %c2_i32_4 : i32
    %10 = arith.extui %9 : i1 to i32
    %c0_i32_5 = arith.constant 0 : i32
    %11 = arith.cmpi ne, %10, %c0_i32_5 : i32
    scf.if %11 {
      %c0 = arith.constant 0 : index
      %c0_6 = arith.constant 0 : index
      %12 = vector.load %arg11[%c0, %c0_6] : memref<8x64xf32, #tpu.memory_space<vmem>>, vector<8x64xf32>
      %c0_7 = arith.constant 0 : index
      %c0_8 = arith.constant 0 : index
      %13 = vector.load %arg2[%c0_7, %c0_8] : memref<64x32xf32, #tpu.memory_space<vmem>>, vector<64x32xf32>
      %cst = arith.constant dense<0.000000e+00> : vector<8x32xf32>
      %14 = tpu.matmul %12, %13, %cst {dimension_numbers = #tpu.dot_dimension_numbers<[1], [0], [0], [1], [0, 0, 1, 1], [], []>} : vector<8x64xf32>, vector<64x32xf32>, vector<8x32xf32> -> vector<8x32xf32>
      %c0_9 = arith.constant 0 : index
      %c0_10 = arith.constant 0 : index
      %15 = vector.load %arg3[%c0_9, %c0_10] : memref<2x32xf32, #tpu.memory_space<vmem>>, vector<2x32xf32>
      %cst_11 = arith.constant dense<0.000000e+00> : vector<32xf32>
      %16 = vector.multi_reduction <add>, %14, %cst_11 [0] : vector<8x32xf32> to vector<32xf32>
      %17 = vector.shape_cast %16 : vector<32xf32> to vector<1x32xf32>
      %cst_12 = arith.constant 8.000000e+00 : f32
      %18 = vector.broadcast %cst_12 : f32 to vector<1x32xf32>
      %19 = arith.divf %17, %18 : vector<1x32xf32>
      %20 = vector.broadcast %19 : vector<1x32xf32> to vector<8x32xf32>
      %21 = arith.subf %14, %20 : vector<8x32xf32>
      %22 = arith.mulf %21, %21 : vector<8x32xf32>
      %cst_13 = arith.constant dense<0.000000e+00> : vector<32xf32>
      %23 = vector.multi_reduction <add>, %22, %cst_13 [0] : vector<8x32xf32> to vector<32xf32>
      %24 = vector.shape_cast %23 : vector<32xf32> to vector<1x32xf32>
      %cst_14 = arith.constant 8.000000e+00 : f32
      %25 = vector.broadcast %cst_14 : f32 to vector<1x32xf32>
      %26 = arith.divf %24, %25 : vector<1x32xf32>
      %27 = vector.broadcast %19 : vector<1x32xf32> to vector<8x32xf32>
      %28 = arith.subf %14, %27 : vector<8x32xf32>
      %cst_15 = arith.constant 9.99999974E-6 : f32
      %29 = vector.broadcast %cst_15 : f32 to vector<1x32xf32>
      %30 = arith.addf %26, %29 : vector<1x32xf32>
      %31 = math.rsqrt %30 : vector<1x32xf32>
      %32 = vector.broadcast %31 : vector<1x32xf32> to vector<8x32xf32>
      %33 = arith.mulf %28, %32 : vector<8x32xf32>
      %34 = vector.extract_strided_slice %15 {offsets = [0, 0], sizes = [1, 32], strides = [1, 1]} : vector<2x32xf32> to vector<1x32xf32>
      %35 = vector.broadcast %34 : vector<1x32xf32> to vector<8x32xf32>
      %36 = arith.mulf %33, %35 : vector<8x32xf32>
      %37 = vector.extract_strided_slice %15 {offsets = [1, 0], sizes = [1, 32], strides = [1, 1]} : vector<2x32xf32> to vector<1x32xf32>
      %38 = vector.broadcast %37 : vector<1x32xf32> to vector<8x32xf32>
      %39 = arith.addf %36, %38 : vector<8x32xf32>
      %cst_16 = arith.constant 0.000000e+00 : f32
      %40 = vector.broadcast %cst_16 : f32 to vector<8x32xf32>
      %41 = arith.maximumf %39, %40 : vector<8x32xf32>
      %c0_17 = arith.constant 0 : index
      %c0_18 = arith.constant 0 : index
      %42 = vector.load %arg4[%c0_17, %c0_18] : memref<32x16xf32, #tpu.memory_space<vmem>>, vector<32x16xf32>
      %cst_19 = arith.constant dense<0.000000e+00> : vector<8x16xf32>
      %43 = tpu.matmul %41, %42, %cst_19 {dimension_numbers = #tpu.dot_dimension_numbers<[1], [0], [0], [1], [0, 0, 1, 1], [], []>} : vector<8x32xf32>, vector<32x16xf32>, vector<8x16xf32> -> vector<8x16xf32>
      %c0_20 = arith.constant 0 : index
      %c0_21 = arith.constant 0 : index
      %44 = vector.load %arg5[%c0_20, %c0_21] : memref<2x16xf32, #tpu.memory_space<vmem>>, vector<2x16xf32>
      %cst_22 = arith.constant dense<0.000000e+00> : vector<16xf32>
      %45 = vector.multi_reduction <add>, %43, %cst_22 [0] : vector<8x16xf32> to vector<16xf32>
      %46 = vector.shape_cast %45 : vector<16xf32> to vector<1x16xf32>
      %cst_23 = arith.constant 8.000000e+00 : f32
      %47 = vector.broadcast %cst_23 : f32 to vector<1x16xf32>
      %48 = arith.divf %46, %47 : vector<1x16xf32>
      %49 = vector.broadcast %48 : vector<1x16xf32> to vector<8x16xf32>
      %50 = arith.subf %43, %49 : vector<8x16xf32>
      %51 = arith.mulf %50, %50 : vector<8x16xf32>
      %cst_24 = arith.constant dense<0.000000e+00> : vector<16xf32>
      %52 = vector.multi_reduction <add>, %51, %cst_24 [0] : vector<8x16xf32> to vector<16xf32>
      %53 = vector.shape_cast %52 : vector<16xf32> to vector<1x16xf32>
      %cst_25 = arith.constant 8.000000e+00 : f32
      %54 = vector.broadcast %cst_25 : f32 to vector<1x16xf32>
      %55 = arith.divf %53, %54 : vector<1x16xf32>
      %56 = vector.broadcast %48 : vector<1x16xf32> to vector<8x16xf32>
      %57 = arith.subf %43, %56 : vector<8x16xf32>
      %cst_26 = arith.constant 9.99999974E-6 : f32
      %58 = vector.broadcast %cst_26 : f32 to vector<1x16xf32>
      %59 = arith.addf %55, %58 : vector<1x16xf32>
      %60 = math.rsqrt %59 : vector<1x16xf32>
      %61 = vector.broadcast %60 : vector<1x16xf32> to vector<8x16xf32>
      %62 = arith.mulf %57, %61 : vector<8x16xf32>
      %63 = vector.extract_strided_slice %44 {offsets = [0, 0], sizes = [1, 16], strides = [1, 1]} : vector<2x16xf32> to vector<1x16xf32>
      %64 = vector.broadcast %63 : vector<1x16xf32> to vector<8x16xf32>
      %65 = arith.mulf %62, %64 : vector<8x16xf32>
      %66 = vector.extract_strided_slice %44 {offsets = [1, 0], sizes = [1, 16], strides = [1, 1]} : vector<2x16xf32> to vector<1x16xf32>
      %67 = vector.broadcast %66 : vector<1x16xf32> to vector<8x16xf32>
      %68 = arith.addf %65, %67 : vector<8x16xf32>
      %cst_27 = arith.constant 0.000000e+00 : f32
      %69 = vector.broadcast %cst_27 : f32 to vector<8x16xf32>
      %70 = arith.maximumf %68, %69 : vector<8x16xf32>
      %c0_28 = arith.constant 0 : index
      %c0_29 = arith.constant 0 : index
      %71 = vector.load %arg6[%c0_28, %c0_29] : memref<16x8xf32, #tpu.memory_space<vmem>>, vector<16x8xf32>
      %cst_30 = arith.constant dense<0.000000e+00> : vector<8x8xf32>
      %72 = tpu.matmul %70, %71, %cst_30 {dimension_numbers = #tpu.dot_dimension_numbers<[1], [0], [0], [1], [0, 0, 1, 1], [], []>} : vector<8x16xf32>, vector<16x8xf32>, vector<8x8xf32> -> vector<8x8xf32>
      %c0_31 = arith.constant 0 : index
      %c0_32 = arith.constant 0 : index
      %73 = vector.load %arg7[%c0_31, %c0_32] : memref<2x8xf32, #tpu.memory_space<vmem>>, vector<2x8xf32>
      %cst_33 = arith.constant dense<0.000000e+00> : vector<8xf32>
      %74 = vector.multi_reduction <add>, %72, %cst_33 [0] : vector<8x8xf32> to vector<8xf32>
      %75 = vector.shape_cast %74 : vector<8xf32> to vector<1x8xf32>
      %cst_34 = arith.constant 8.000000e+00 : f32
      %76 = vector.broadcast %cst_34 : f32 to vector<1x8xf32>
      %77 = arith.divf %75, %76 : vector<1x8xf32>
      %78 = vector.broadcast %77 : vector<1x8xf32> to vector<8x8xf32>
      %79 = arith.subf %72, %78 : vector<8x8xf32>
      %80 = arith.mulf %79, %79 : vector<8x8xf32>
      %cst_35 = arith.constant dense<0.000000e+00> : vector<8xf32>
      %81 = vector.multi_reduction <add>, %80, %cst_35 [0] : vector<8x8xf32> to vector<8xf32>
      %82 = vector.shape_cast %81 : vector<8xf32> to vector<1x8xf32>
      %cst_36 = arith.constant 8.000000e+00 : f32
      %83 = vector.broadcast %cst_36 : f32 to vector<1x8xf32>
      %84 = arith.divf %82, %83 : vector<1x8xf32>
      %85 = vector.broadcast %77 : vector<1x8xf32> to vector<8x8xf32>
      %86 = arith.subf %72, %85 : vector<8x8xf32>
      %cst_37 = arith.constant 9.99999974E-6 : f32
      %87 = vector.broadcast %cst_37 : f32 to vector<1x8xf32>
      %88 = arith.addf %84, %87 : vector<1x8xf32>
      %89 = math.rsqrt %88 : vector<1x8xf32>
      %90 = vector.broadcast %89 : vector<1x8xf32> to vector<8x8xf32>
      %91 = arith.mulf %86, %90 : vector<8x8xf32>
      %92 = vector.extract_strided_slice %73 {offsets = [0, 0], sizes = [1, 8], strides = [1, 1]} : vector<2x8xf32> to vector<1x8xf32>
      %93 = vector.broadcast %92 : vector<1x8xf32> to vector<8x8xf32>
      %94 = arith.mulf %91, %93 : vector<8x8xf32>
      %95 = vector.extract_strided_slice %73 {offsets = [1, 0], sizes = [1, 8], strides = [1, 1]} : vector<2x8xf32> to vector<1x8xf32>
      %96 = vector.broadcast %95 : vector<1x8xf32> to vector<8x8xf32>
      %97 = arith.addf %94, %96 : vector<8x8xf32>
      %cst_38 = arith.constant 0.000000e+00 : f32
      %98 = vector.broadcast %cst_38 : f32 to vector<8x8xf32>
      %99 = arith.maximumf %97, %98 : vector<8x8xf32>
      %c0_39 = arith.constant 0 : index
      %c0_40 = arith.constant 0 : index
      %100 = vector.load %arg8[%c0_39, %c0_40] : memref<8x128xf32, #tpu.memory_space<vmem>>, vector<8x128xf32>
      %cst_41 = arith.constant dense<0.000000e+00> : vector<8x128xf32>
      %101 = tpu.matmul %99, %100, %cst_41 {dimension_numbers = #tpu.dot_dimension_numbers<[1], [0], [0], [1], [0, 0, 1, 1], [], []>} : vector<8x8xf32>, vector<8x128xf32>, vector<8x128xf32> -> vector<8x128xf32>
      %c0_42 = arith.constant 0 : index
      %c0_43 = arith.constant 0 : index
      %102 = vector.load %arg9[%c0_42, %c0_43] : memref<1x128xf32, #tpu.memory_space<vmem>>, vector<1x128xf32>
      %103 = vector.broadcast %102 : vector<1x128xf32> to vector<8x128xf32>
      %104 = arith.addf %101, %103 : vector<8x128xf32>
      %105 = tpu.iota {dimensions = array<i32: 1>} : vector<8x128xi32>
      %c4_i32 = arith.constant 4 : i32
      %106 = vector.broadcast %c4_i32 : i32 to vector<8x128xi32>
      %107 = arith.cmpi slt, %105, %106 : vector<8x128xi32>
      %108 = arith.mulf %104, %104 : vector<8x128xf32>
      %cst_44 = arith.constant 0.000000e+00 : f32
      %109 = vector.broadcast %cst_44 : f32 to vector<8x128xf32>
      %110 = arith.select %107, %108, %109 : vector<8x128xi1>, vector<8x128xf32>
      %cst_45 = arith.constant dense<0.000000e+00> : vector<8xf32>
      %111 = vector.multi_reduction <add>, %110, %cst_45 [1] : vector<8x128xf32> to vector<8xf32>
      %112 = vector.shape_cast %111 : vector<8xf32> to vector<8x1xf32>
      %cst_46 = arith.constant 9.99999996E-13 : f32
      %113 = vector.broadcast %cst_46 : f32 to vector<8x1xf32>
      %114 = arith.maximumf %112, %113 : vector<8x1xf32>
      %115 = math.rsqrt %114 : vector<8x1xf32>
      %116 = vector.broadcast %115 : vector<8x1xf32> to vector<8x128xf32>
      %117 = arith.mulf %104, %116 : vector<8x128xf32>
      %118 = arith.select %107, %117, %104 : vector<8x128xi1>, vector<8x128xf32>
      %c0_47 = arith.constant 0 : index
      %c0_48 = arith.constant 0 : index
      %119 = vector.load %arg10[%c0_47, %c0_48] : memref<8x128xf32, #tpu.memory_space<vmem>>, vector<8x128xf32>
      tpu.vector_store %arg10[%c0_47, %c0_48], %118 {strides = array<i32>} : memref<8x128xf32, #tpu.memory_space<vmem>>, vector<8x128xf32>,
    } else {
    }
    return
  }
  func.func @transform_0(%arg0: i32) -> (i32, i32, i32) {
    %c0_i32 = arith.constant 0 : i32
    %c0_i32_0 = arith.constant 0 : i32
    %c0_i32_1 = arith.constant 0 : i32
    return %c0_i32, %arg0, %c0_i32_0 : i32, i32, i32
  }
  func.func @transform_1(%arg0: i32) -> (i32, i32) {
    %c0_i32 = arith.constant 0 : i32
    %c0_i32_0 = arith.constant 0 : i32
    %c0_i32_1 = arith.constant 0 : i32
    return %c0_i32, %c0_i32_0 : i32, i32
  }
  func.func @transform_2(%arg0: i32) -> (i32, i32) {
    %c0_i32 = arith.constant 0 : i32
    %c0_i32_0 = arith.constant 0 : i32
    %c0_i32_1 = arith.constant 0 : i32
    return %c0_i32, %c0_i32_0 : i32, i32
  }
  func.func @transform_3(%arg0: i32) -> (i32, i32) {
    %c0_i32 = arith.constant 0 : i32
    %c0_i32_0 = arith.constant 0 : i32
    %c0_i32_1 = arith.constant 0 : i32
    return %c0_i32, %c0_i32_0 : i32, i32
  }
  func.func @transform_4(%arg0: i32) -> (i32, i32) {
    %c0_i32 = arith.constant 0 : i32
    %c0_i32_0 = arith.constant 0 : i32
    %c0_i32_1 = arith.constant 0 : i32
    return %c0_i32, %c0_i32_0 : i32, i32
  }
  func.func @transform_5(%arg0: i32) -> (i32, i32) {
    %c0_i32 = arith.constant 0 : i32
    %c0_i32_0 = arith.constant 0 : i32
    %c0_i32_1 = arith.constant 0 : i32
    return %c0_i32, %c0_i32_0 : i32, i32
  }
  func.func @transform_6(%arg0: i32) -> (i32, i32) {
    %c0_i32 = arith.constant 0 : i32
    %c0_i32_0 = arith.constant 0 : i32
    %c0_i32_1 = arith.constant 0 : i32
    return %c0_i32, %c0_i32_0 : i32, i32
  }
  func.func @transform_7(%arg0: i32) -> (i32, i32) {
    %c0_i32 = arith.constant 0 : i32
    %c0_i32_0 = arith.constant 0 : i32
    %c0_i32_1 = arith.constant 0 : i32
    return %c0_i32, %c0_i32_0 : i32, i32
  }
  func.func @transform_8(%arg0: i32) -> (i32, i32) {
    %c0_i32 = arith.constant 0 : i32
    %c0_i32_0 = arith.constant 0 : i32
    %c0_i32_1 = arith.constant 0 : i32
    return %c0_i32, %c0_i32_0 : i32, i32
  }
  func.func @transform_9(%arg0: i32) -> (i32, i32) {
    %c0_i32 = arith.constant 0 : i32
    %c0_i32_0 = arith.constant 0 : i32
    %c0_i32_1 = arith.constant 0 : i32
    return %c0_i32, %c0_i32_0 : i32, i32
  }
}

</mosaic_0001>

<llo_original>
// kernel: tpu_custom_call.1
$region0: #{tpu_custom_call.1}
  #allocation0 [shape = 'u32[]', space=smem, size = 0x4, offset = 0x4, fixed_abs, tag = 'smem constant byte address 0x4 - core index']
  #allocation1 [shape = 'u32[144,128]{1,0:T(1,128)}', space=vmem, size = 0x12000, scoped, tag = 'internal scratch']
  #allocation2 [shape = 'f32[8,64]{1,0:T(8,128)}', space=vmem, size = 0x1000, scoped, tag = 'scratch operand']
  %s0 = inlined_call_operand.vmem [shape: f32[8,20,64], index: 0, kind: input, shape index: {}]
  %s1 = inlined_call_operand.vmem [shape: f32[64,32], index: 1, kind: input, shape index: {}]
  %s2 = inlined_call_operand.vmem [shape: f32[2,32], index: 2, kind: input, shape index: {}]
  %s3 = inlined_call_operand.vmem [shape: f32[32,16], index: 3, kind: input, shape index: {}]
  %s4 = inlined_call_operand.vmem [shape: f32[2,16], index: 4, kind: input, shape index: {}]
  %s5 = inlined_call_operand.vmem [shape: f32[16,8], index: 5, kind: input, shape index: {}]
  %s6 = inlined_call_operand.vmem [shape: f32[2,8], index: 6, kind: input, shape index: {}]
  %s7 = inlined_call_operand.vmem [shape: f32[8,128], index: 7, kind: input, shape index: {}]
  %s8 = inlined_call_operand.vmem [shape: f32[1,128], index: 8, kind: input, shape index: {}]
  %s9 = inlined_call_operand.hbm [shape: f32[8,128], index: 9, kind: output, shape index: {}]
  %s10 = sld [smem:[#allocation0]]
  $region123: #{tpu_custom_call.1} parent=0
    _
  %s12 = ssub.s32 1, %s10
  %s13 = scalar_select 0, %s12, %s10
  $region1: #{tpu_custom_call.1} parent=0
    #allocation3 [shape = 'u8[65536]{0}', space=vmem, size = 0x10000, scoped, tag = 'input window, operand 0']
    #allocation4 [shape = 'u8[4096]{0}', space=vmem, size = 0x1000, scoped, tag = 'output window, operand 0, single buffered']
    #allocation5 [shape = 's32[2]{0}', space=sflag, size = 0x8, scoped, tag = 'scoped memory for tpu_custom_call.1']
    %14 = vsyncpa [#allocation5], 0
    loop: start=0, step=1, limit=5
    $region2: #{tpu_custom_call.1} parent=1 // loop_pre_header
      _
    $region3: #{tpu_custom_call.1} parent=1 // loop_header
      %s16 = sphi 0, %s20
      %p17 = scmp.ge.s32.totalorder %s16, 5
      %s26 = sphi 0, %s28
      %s29 = sphi 0, %s26
      %s30 = sphi 0, %s29
      %s46 = sphi 0, %s30
      %s50 = sphi 0, %s50
      %s52 = sphi 0, %s50
      %s53 = sphi 0, %s52
      %s67 = sphi 0, %s53
      %s71 = sphi 0, %s71
      %s73 = sphi 0, %s71
      %s74 = sphi 0, %s73
      %s88 = sphi 0, %s74
      %s92 = sphi 0, %s92
      %s94 = sphi 0, %s92
      %s95 = sphi 0, %s94
      %s109 = sphi 0, %s95
      %s113 = sphi 0, %s113
      %s115 = sphi 0, %s113
      %s116 = sphi 0, %s115
      %s130 = sphi 0, %s116
      %s134 = sphi 0, %s134
      %s136 = sphi 0, %s134
      %s137 = sphi 0, %s136
      %s151 = sphi 0, %s137
      %s155 = sphi 0, %s155
      %s157 = sphi 0, %s155
      %s158 = sphi 0, %s157
      %s172 = sphi 0, %s158
      %s176 = sphi 0, %s176
      %s178 = sphi 0, %s176
      %s179 = sphi 0, %s178
      %s193 = sphi 0, %s179
      %s197 = sphi 0, %s197
      %s199 = sphi 0, %s197
      %s200 = sphi 0, %s199
      %s214 = sphi 0, %s200
      %s218 = sphi 0, %s218
      %s220 = sphi 0, %s218
      %s221 = sphi 0, %s220
      %s235 = sphi 0, %s221
    $region4: #{tpu_custom_call.1} parent=1 // loop_header_branch
      %19 = sbr.rel (%p17) target = $region8
    $region5: #{tpu_custom_call.1} parent=1 // loop_body
      %s21 = ssub.s32 %s16, 1
      %s22 = ssub.s32 %s16, 2
      %s23 = sadd.s32 %s16, 1
      %s24 = ssub.s32 %s16, %s23
      %p25 = scmp.eq.s32.totalorder %s24, 0
      %s27 = sadd.s32 %s26, 1
      %s28 = scalar_select %p25, %s26, %s27
      %p31 = pneg %p25
      %p32 = scmp.eq.s32.totalorder %s16, 2
      %p33 = por %p31, %p32
      %p34 = scmp.ne.s32.totalorder %s26, %s29
      %p35 = scmp.eq.s32.totalorder %s16, 0
      %p36 = por %p34, %p35
      %p37 = scmp.ne.s32.totalorder %s26, %s29
      %p38 = scmp.eq.s32.totalorder %s21, 2
      %p39 = por %p37, %p38
      %p40 = scmp.ne.s32.totalorder %s29, %s30
      %p41 = scmp.eq.s32.totalorder %s21, 0
      %p42 = por %p40, %p41
      %p43 = scmp.ne.s32.totalorder %s29, %s30
      %p44 = scmp.eq.s32.totalorder %s22, 2
      %p45 = por %p43, %p44
      %p47 = scmp.ne.s32.totalorder %s30, %s46
      %p48 = scmp.eq.s32.totalorder %s22, 0
      %p49 = por %p47, %p48
      %s51 = sadd.s32 %s50, 1
      %p54 = scmp.eq.s32.totalorder %s16, 2
      %p55 = scmp.ne.s32.totalorder %s50, %s52
      %p56 = scmp.eq.s32.totalorder %s16, 0
      %p57 = por %p55, %p56
      %p58 = scmp.ne.s32.totalorder %s50, %s52
      %p59 = scmp.eq.s32.totalorder %s21, 2
      %p60 = por %p58, %p59
      %p61 = scmp.ne.s32.totalorder %s52, %s53
      %p62 = scmp.eq.s32.totalorder %s21, 0
      %p63 = por %p61, %p62
      %p64 = scmp.ne.s32.totalorder %s52, %s53
      %p65 = scmp.eq.s32.totalorder %s22, 2
      %p66 = por %p64, %p65
      %p68 = scmp.ne.s32.totalorder %s53, %s67
      %p69 = scmp.eq.s32.totalorder %s22, 0
      %p70 = por %p68, %p69
      %s72 = sadd.s32 %s71, 1
      %p75 = scmp.eq.s32.totalorder %s16, 2
      %p76 = scmp.ne.s32.totalorder %s71, %s73
      %p77 = scmp.eq.s32.totalorder %s16, 0
      %p78 = por %p76, %p77
      %p79 = scmp.ne.s32.totalorder %s71, %s73
      %p80 = scmp.eq.s32.totalorder %s21, 2
      %p81 = por %p79, %p80
      %p82 = scmp.ne.s32.totalorder %s73, %s74
      %p83 = scmp.eq.s32.totalorder %s21, 0
      %p84 = por %p82, %p83
      %p85 = scmp.ne.s32.totalorder %s73, %s74
      %p86 = scmp.eq.s32.totalorder %s22, 2
      %p87 = por %p85, %p86
      %p89 = scmp.ne.s32.totalorder %s74, %s88
      %p90 = scmp.eq.s32.totalorder %s22, 0
      %p91 = por %p89, %p90
      %s93 = sadd.s32 %s92, 1
      %p96 = scmp.eq.s32.totalorder %s16, 2
      %p97 = scmp.ne.s32.totalorder %s92, %s94
      %p98 = scmp.eq.s32.totalorder %s16, 0
      %p99 = por %p97, %p98
      %p100 = scmp.ne.s32.totalorder %s92, %s94
      %p101 = scmp.eq.s32.totalorder %s21, 2
      %p102 = por %p100, %p101
      %p103 = scmp.ne.s32.totalorder %s94, %s95
      %p104 = scmp.eq.s32.totalorder %s21, 0
      %p105 = por %p103, %p104
      %p106 = scmp.ne.s32.totalorder %s94, %s95
      %p107 = scmp.eq.s32.totalorder %s22, 2
      %p108 = por %p106, %p107
      %p110 = scmp.ne.s32.totalorder %s95, %s109
      %p111 = scmp.eq.s32.totalorder %s22, 0
      %p112 = por %p110, %p111
      %s114 = sadd.s32 %s113, 1
      %p117 = scmp.eq.s32.totalorder %s16, 2
      %p118 = scmp.ne.s32.totalorder %s113, %s115
      %p119 = scmp.eq.s32.totalorder %s16, 0
      %p120 = por %p118, %p119
      %p121 = scmp.ne.s32.totalorder %s113, %s115
      %p122 = scmp.eq.s32.totalorder %s21, 2
      %p123 = por %p121, %p122
      %p124 = scmp.ne.s32.totalorder %s115, %s116
      %p125 = scmp.eq.s32.totalorder %s21, 0
      %p126 = por %p124, %p125
      %p127 = scmp.ne.s32.totalorder %s115, %s116
      %p128 = scmp.eq.s32.totalorder %s22, 2
      %p129 = por %p127, %p128
      %p131 = scmp.ne.s32.totalorder %s116, %s130
      %p132 = scmp.eq.s32.totalorder %s22, 0
      %p133 = por %p131, %p132
      %s135 = sadd.s32 %s134, 1
      %p138 = scmp.eq.s32.totalorder %s16, 2
      %p139 = scmp.ne.s32.totalorder %s134, %s136
      %p140 = scmp.eq.s32.totalorder %s16, 0
      %p141 = por %p139, %p140
      %p142 = scmp.ne.s32.totalorder %s134, %s136
      %p143 = scmp.eq.s32.totalorder %s21, 2
      %p144 = por %p142, %p143
      %p145 = scmp.ne.s32.totalorder %s136, %s137
      %p146 = scmp.eq.s32.totalorder %s21, 0
      %p147 = por %p145, %p146
      %p148 = scmp.ne.s32.totalorder %s136, %s137
      %p149 = scmp.eq.s32.totalorder %s22, 2
      %p150 = por %p148, %p149
      %p152 = scmp.ne.s32.totalorder %s137, %s151
      %p153 = scmp.eq.s32.totalorder %s22, 0
      %p154 = por %p152, %p153
      %s156 = sadd.s32 %s155, 1
      %p159 = scmp.eq.s32.totalorder %s16, 2
      %p160 = scmp.ne.s32.totalorder %s155, %s157
      %p161 = scmp.eq.s32.totalorder %s16, 0
      %p162 = por %p160, %p161
      %p163 = scmp.ne.s32.totalorder %s155, %s157
      %p164 = scmp.eq.s32.totalorder %s21, 2
      %p165 = por %p163, %p164
      %p166 = scmp.ne.s32.totalorder %s157, %s158
      %p167 = scmp.eq.s32.totalorder %s21, 0
      %p168 = por %p166, %p167
      %p169 = scmp.ne.s32.totalorder %s157, %s158
      %p170 = scmp.eq.s32.totalorder %s22, 2
      %p171 = por %p169, %p170
      %p173 = scmp.ne.s32.totalorder %s158, %s172
      %p174 = scmp.eq.s32.totalorder %s22, 0
      %p175 = por %p173, %p174
      %s177 = sadd.s32 %s176, 1
      %p180 = scmp.eq.s32.totalorder %s16, 2
      %p181 = scmp.ne.s32.totalorder %s176, %s178
      %p182 = scmp.eq.s32.totalorder %s16, 0
      %p183 = por %p181, %p182
      %p184 = scmp.ne.s32.totalorder %s176, %s178
      %p185 = scmp.eq.s32.totalorder %s21, 2
      %p186 = por %p184, %p185
      %p187 = scmp.ne.s32.totalorder %s178, %s179
      %p188 = scmp.eq.s32.totalorder %s21, 0
      %p189 = por %p187, %p188
      %p190 = scmp.ne.s32.totalorder %s178, %s179
      %p191 = scmp.eq.s32.totalorder %s22, 2
      %p192 = por %p190, %p191
      %p194 = scmp.ne.s32.totalorder %s179, %s193
      %p195 = scmp.eq.s32.totalorder %s22, 0
      %p196 = por %p194, %p195
      %s198 = sadd.s32 %s197, 1
      %p201 = scmp.eq.s32.totalorder %s16, 2
      %p202 = scmp.ne.s32.totalorder %s197, %s199
      %p203 = scmp.eq.s32.totalorder %s16, 0
      %p204 = por %p202, %p203
      %p205 = scmp.ne.s32.totalorder %s197, %s199
      %p206 = scmp.eq.s32.totalorder %s21, 2
      %p207 = por %p205, %p206
      %p208 = scmp.ne.s32.totalorder %s199, %s200
      %p209 = scmp.eq.s32.totalorder %s21, 0
      %p210 = por %p208, %p209
      %p211 = scmp.ne.s32.totalorder %s199, %s200
      %p212 = scmp.eq.s32.totalorder %s22, 2
      %p213 = por %p211, %p212
      %p215 = scmp.ne.s32.totalorder %s200, %s214
      %p216 = scmp.eq.s32.totalorder %s22, 0
      %p217 = por %p215, %p216
      %s219 = sadd.s32 %s218, 1
      %p222 = scmp.eq.s32.totalorder %s16, 2
      %p223 = scmp.ne.s32.totalorder %s218, %s220
      %p224 = scmp.eq.s32.totalorder %s16, 0
      %p225 = por %p223, %p224
      %p226 = scmp.ne.s32.totalorder %s218, %s220
      %p227 = scmp.eq.s32.totalorder %s21, 2
      %p228 = por %p226, %p227
      %p229 = scmp.ne.s32.totalorder %s220, %s221
      %p230 = scmp.eq.s32.totalorder %s21, 0
      %p231 = por %p229, %p230
      %p232 = scmp.ne.s32.totalorder %s220, %s221
      %p233 = scmp.eq.s32.totalorder %s22, 2
      %p234 = por %p232, %p233
      %p236 = scmp.ne.s32.totalorder %s221, %s235
      %p237 = scmp.eq.s32.totalorder %s22, 0
      %p238 = por %p236, %p237
      %p239 = scmp.le.s32.totalorder 1, %s16
      %p240 = scmp.lt.s32.totalorder %s16, 4
      %p241 = pnand %p239, %p240
      %p242 = pneg %p241
      // Predicated region
      $region9: #{tpu_custom_call.1} parent=5 // pred_check
        _
      $region10: #{tpu_custom_call.1} parent=5 // pred_check_branch
        %244 = sbr.rel (%p241) target = $region12
      $region11: #{tpu_custom_call.1} parent=5 // pred_region
        %s245 = ssub.s32 %s16, 1
        // Predicated region
        $region13: #{tpu_custom_call.1} parent=11 // pred_check
          %p246 = pneg %p63
        $region14: #{tpu_custom_call.1} parent=11 // pred_check_branch
          %248 = sbr.rel (%p246) target = $region16
        $region15: #{tpu_custom_call.1} parent=11 // pred_region
          _
        $region16: #{tpu_custom_call.1} parent=11 // pred_fallthru
          _
        // Predicated region
        $region17: #{tpu_custom_call.1} parent=11 // pred_check
          %p249 = pneg %p84
        $region18: #{tpu_custom_call.1} parent=11 // pred_check_branch
          %251 = sbr.rel (%p249) target = $region20
        $region19: #{tpu_custom_call.1} parent=11 // pred_region
          _
        $region20: #{tpu_custom_call.1} parent=11 // pred_fallthru
          _
        // Predicated region
        $region21: #{tpu_custom_call.1} parent=11 // pred_check
          %p252 = pneg %p105
        $region22: #{tpu_custom_call.1} parent=11 // pred_check_branch
          %254 = sbr.rel (%p252) target = $region24
        $region23: #{tpu_custom_call.1} parent=11 // pred_region
          _
        $region24: #{tpu_custom_call.1} parent=11 // pred_fallthru
          _
        // Predicated region
        $region25: #{tpu_custom_call.1} parent=11 // pred_check
          %p255 = pneg %p126
        $region26: #{tpu_custom_call.1} parent=11 // pred_check_branch
          %257 = sbr.rel (%p255) target = $region28
        $region27: #{tpu_custom_call.1} parent=11 // pred_region
          _
        $region28: #{tpu_custom_call.1} parent=11 // pred_fallthru
          _
        // Predicated region
        $region29: #{tpu_custom_call.1} parent=11 // pred_check
          %p258 = pneg %p147
        $region30: #{tpu_custom_call.1} parent=11 // pred_check_branch
          %260 = sbr.rel (%p258) target = $region32
        $region31: #{tpu_custom_call.1} parent=11 // pred_region
          _
        $region32: #{tpu_custom_call.1} parent=11 // pred_fallthru
          _
        // Predicated region
        $region33: #{tpu_custom_call.1} parent=11 // pred_check
          %p261 = pneg %p168
        $region34: #{tpu_custom_call.1} parent=11 // pred_check_branch
          %263 = sbr.rel (%p261) target = $region36
        $region35: #{tpu_custom_call.1} parent=11 // pred_region
          _
        $region36: #{tpu_custom_call.1} parent=11 // pred_fallthru
          _
        // Predicated region
        $region37: #{tpu_custom_call.1} parent=11 // pred_check
          %p264 = pneg %p189
        $region38: #{tpu_custom_call.1} parent=11 // pred_check_branch
          %266 = sbr.rel (%p264) target = $region40
        $region39: #{tpu_custom_call.1} parent=11 // pred_region
          _
        $region40: #{tpu_custom_call.1} parent=11 // pred_fallthru
          _
        // Predicated region
        $region41: #{tpu_custom_call.1} parent=11 // pred_check
          %p267 = pneg %p210
        $region42: #{tpu_custom_call.1} parent=11 // pred_check_branch
          %269 = sbr.rel (%p267) target = $region44
        $region43: #{tpu_custom_call.1} parent=11 // pred_region
          _
        $region44: #{tpu_custom_call.1} parent=11 // pred_fallthru
          _
      $region12: #{tpu_custom_call.1} parent=5 // pred_fallthru
        _
      %p270 = scmp.lt.s32.totalorder %s16, 3
      // Predicated region
      $region45: #{tpu_custom_call.1} parent=5 // pred_check
        %p271 = pneg %p270
      $region46: #{tpu_custom_call.1} parent=5 // pred_check_branch
        %273 = sbr.rel (%p271) target = $region48
      $region47: #{tpu_custom_call.1} parent=5 // pred_region
        // Predicated region
        $region49: #{tpu_custom_call.1} parent=47 // pred_check
          %p274 = pneg %p36
        $region50: #{tpu_custom_call.1} parent=47 // pred_check_branch
          %276 = sbr.rel (%p274) target = $region52
        $region51: #{tpu_custom_call.1} parent=47 // pred_region
          %s277 = sand.u32 %s26, 1
          %s278 = sand.u32 %s26, 1
          %s279 = smul.addr %s278, 64
          %s280 = scalar_lea.vmem [#allocation3], %s279
          %s281 = smul.addr %s16, 8
          %s282 = scalar_lea.vmem %s0, %s281
          // Predicated region
          $region53: #{tpu_custom_call.1} parent=51 // pred_check
            _
          $region54: #{tpu_custom_call.1} parent=51 // pred_check_branch
            %284 = sbr.rel (0) target = $region56
          $region55: #{tpu_custom_call.1} parent=51 // pred_region
            // Predicated region
            $region57: #{tpu_custom_call.1} parent=55 // pred_check
              _
            $region58: #{tpu_custom_call.1} parent=55 // pred_check_branch
              %286 = sbr.rel (0) target = $region60
            $region59: #{tpu_custom_call.1} parent=55 // pred_region
              // Predicated region
              $region72: #{tpu_custom_call.1} parent=59 // pred_check
                _
              $region73: #{tpu_custom_call.1} parent=59 // pred_check_branch
                %315 = sbr.rel (0) target = $region75
              $region74: #{tpu_custom_call.1} parent=59 // pred_region
                loop: start=0, step=1, limit=1
                $region76: #{tpu_custom_call.1} parent=74 // loop_pre_header
                  _
                $region77: #{tpu_custom_call.1} parent=74 // loop_header
                  %s317 = sphi 0, %s321
                  %p318 = scmp.ge.s32.totalorder %s317, 1
                  %s322 = sphi %s282, %s282
                  %s323 = sphi %s280, %s280
                $region78: #{tpu_custom_call.1} parent=74 // loop_header_branch
                  %320 = sbr.rel (%p318) target = $region82
                $region79: #{tpu_custom_call.1} parent=74 // loop_body
                  %v324 = vld [vmem:[%s322] sm:$0xff]
                  %325 = vst [vmem:[%s323] sm:$0xff] %v324
                  %v326 = vld [vmem:[%s322 + $0x18] sm:$0xff]
                  %327 = vst [vmem:[%s323 + $0x8] sm:$0xff] %v326
                  %v328 = vld [vmem:[%s322 + $0x30] sm:$0xff]
                  %329 = vst [vmem:[%s323 + $0x10] sm:$0xff] %v328
                  %v330 = vld [vmem:[%s322 + $0x48] sm:$0xff]
                  %331 = vst [vmem:[%s323 + $0x18] sm:$0xff] %v330
                  %v332 = vld [vmem:[%s322 + $0x60] sm:$0xff]
                  %333 = vst [vmem:[%s323 + $0x20] sm:$0xff] %v332
                  %v334 = vld [vmem:[%s322 + $0x78] sm:$0xff]
                  %335 = vst [vmem:[%s323 + $0x28] sm:$0xff] %v334
                  %v336 = vld [vmem:[%s322 + $0x90] sm:$0xff]
                  %337 = vst [vmem:[%s323 + $0x30] sm:$0xff] %v336
                  %v338 = vld [vmem:[%s322 + $0xa8] sm:$0xff]
                  %339 = vst [vmem:[%s323 + $0x38] sm:$0xff] %v338
                $region80: #{tpu_custom_call.1} parent=74 // loop_footer
                  %s321 = sadd.s32 1, %s317
                $region81: #{tpu_custom_call.1} parent=74 // loop_footer_branch
                  %316 = sbr.rel target = $region77
                $region82: #{tpu_custom_call.1} parent=74 // loop_exit
                  _
              $region75: #{tpu_custom_call.1} parent=59 // pred_fallthru
                _
              // Predicated region
              $region83: #{tpu_custom_call.1} parent=59 // pred_check
                _
              $region84: #{tpu_custom_call.1} parent=59 // pred_check_branch
                %341 = sbr.rel target = $region86
              $region85: #{tpu_custom_call.1} parent=59 // pred_region
                _
              $region86: #{tpu_custom_call.1} parent=59 // pred_fallthru
                _
            $region60: #{tpu_custom_call.1} parent=55 // pred_fallthru
              _
            // Predicated region
            $region61: #{tpu_custom_call.1} parent=55 // pred_check
              _
            $region62: #{tpu_custom_call.1} parent=55 // pred_check_branch
              %288 = sbr.rel target = $region64
            $region63: #{tpu_custom_call.1} parent=55 // pred_region
              loop: start=0, step=1, limit=1
              $region65: #{tpu_custom_call.1} parent=63 // loop_pre_header
                _
              $region66: #{tpu_custom_call.1} parent=63 // loop_header
                %s291 = sphi 0, %s295
                %p292 = scmp.ge.s32.totalorder %s291, 1
                %s296 = sphi %s282, %s282
                %s297 = sphi %s280, %s280
              $region67: #{tpu_custom_call.1} parent=63 // loop_header_branch
                %294 = sbr.rel (%p292) target = $region71
              $region68: #{tpu_custom_call.1} parent=63 // loop_body
                %v298 = vld [vmem:[%s296] sm:$0xff]
                %299 = vst [vmem:[%s297] sm:$0xff] %v298
                %v300 = vld [vmem:[%s296 + $0x18] sm:$0xff]
                %301 = vst [vmem:[%s297 + $0x8] sm:$0xff] %v300
                %v302 = vld [vmem:[%s296 + $0x30] sm:$0xff]
                %303 = vst [vmem:[%s297 + $0x10] sm:$0xff] %v302
                %v304 = vld [vmem:[%s296 + $0x48] sm:$0xff]
                %305 = vst [vmem:[%s297 + $0x18] sm:$0xff] %v304
                %v306 = vld [vmem:[%s296 + $0x60] sm:$0xff]
                %307 = vst [vmem:[%s297 + $0x20] sm:$0xff] %v306
                %v308 = vld [vmem:[%s296 + $0x78] sm:$0xff]
                %309 = vst [vmem:[%s297 + $0x28] sm:$0xff] %v308
                %v310 = vld [vmem:[%s296 + $0x90] sm:$0xff]
                %311 = vst [vmem:[%s297 + $0x30] sm:$0xff] %v310
                %v312 = vld [vmem:[%s296 + $0xa8] sm:$0xff]
                %313 = vst [vmem:[%s297 + $0x38] sm:$0xff] %v312
              $region69: #{tpu_custom_call.1} parent=63 // loop_footer
                %s295 = sadd.s32 1, %s291
              $region70: #{tpu_custom_call.1} parent=63 // loop_footer_branch
                %290 = sbr.rel target = $region66
              $region71: #{tpu_custom_call.1} parent=63 // loop_exit
                _
            $region64: #{tpu_custom_call.1} parent=55 // pred_fallthru
              _
          $region56: #{tpu_custom_call.1} parent=51 // pred_fallthru
            _
          %342 = vnop
        $region52: #{tpu_custom_call.1} parent=47 // pred_fallthru
          _
      $region48: #{tpu_custom_call.1} parent=5 // pred_fallthru
        _
      %p343 = scmp.le.s32.totalorder 1, %s16
      %p344 = scmp.lt.s32.totalorder %s16, 4
      %p345 = pnand %p343, %p344
      %p346 = pneg %p345
      // Predicated region
      $region87: #{tpu_custom_call.1} parent=5 // pred_check
        _
      $region88: #{tpu_custom_call.1} parent=5 // pred_check_branch
        %348 = sbr.rel (%p345) target = $region90
      $region89: #{tpu_custom_call.1} parent=5 // pred_region
        %s349 = ssub.s32 %s16, 1
        %s350 = sand.u32 %s29, 1
        %s351 = sand.u32 %s29, 1
        %s352 = smul.addr %s351, 64
        %s353 = scalar_lea.vmem [#allocation3], %s352
        // Predicated region
        $region91: #{tpu_custom_call.1} parent=89 // pred_check
          %p354 = pneg %p42
        $region92: #{tpu_custom_call.1} parent=89 // pred_check_branch
          %356 = sbr.rel (%p354) target = $region94
        $region93: #{tpu_custom_call.1} parent=89 // pred_region
          _
        $region94: #{tpu_custom_call.1} parent=89 // pred_fallthru
          _
        %s357 = sand.u32 %s29, 1
        %s358 = sand.u32 %s29, 1
        %s359 = smul.addr %s358, 64
        %s360 = scalar_lea.vmem [#allocation3], %s359
        %p361 = pneg %p42
        %p362 = pneg %p39
        %p363 = pneg %p63
        %p364 = pneg %p60
        %p365 = pneg %p84
        %p366 = pneg %p81
        %p367 = pneg %p105
        %p368 = pneg %p102
        %p369 = pneg %p126
        %p370 = pneg %p123
        %p371 = pneg %p147
        %p372 = pneg %p144
        %p373 = pneg %p168
        %p374 = pneg %p165
        %p375 = pneg %p189
        %p376 = pneg %p186
        %p377 = pneg %p210
        %p378 = pneg %p207
        %p379 = pneg %p231
        %p380 = pneg %p228
        %p381 = scmp.eq.s32.totalorder %s21, 0
        // Predicated region
        $region95: #{tpu_custom_call.1} parent=89 // pred_check
          %p382 = pneg %p381
        $region96: #{tpu_custom_call.1} parent=89 // pred_check_branch
          %384 = sbr.rel (%p382) target = $region98
        $region97: #{tpu_custom_call.1} parent=89 // pred_region
          %vm385 = vcmask 523264
          %386 = vst.msk [vmem:[#allocation2] sm:$0xff] %vm385, -inf
        $region98: #{tpu_custom_call.1} parent=89 // pred_fallthru
          _
        %p387 = scmp.eq.s32.totalorder %s21, 2
        // Predicated region
        $region99: #{tpu_custom_call.1} parent=89 // pred_check
          %p388 = pneg %p387
        $region100: #{tpu_custom_call.1} parent=89 // pred_check_branch
          %390 = sbr.rel (%p388) target = $region102
        $region101: #{tpu_custom_call.1} parent=89 // pred_region
          %v391 = vld [vmem:[%s353] sm:$0xff]
          %v392 = vld [vmem:[%s353 + $0x8] sm:$0xff]
          %v393 = vld [vmem:[%s353 + $0x10] sm:$0xff]
          %v394 = vld [vmem:[%s353 + $0x18] sm:$0xff]
          %v395 = vld [vmem:[%s353 + $0x20] sm:$0xff]
          %v396 = vld [vmem:[%s353 + $0x28] sm:$0xff]
          %v397 = vld [vmem:[%s353 + $0x30] sm:$0xff]
          %v398 = vld [vmem:[%s353 + $0x38] sm:$0xff]
          %v399 = vlaneseq
          %v400 = vshrl.u32 %v399, 7
          %s401 = smul.u32 %s21, 8
          %v402 = vstv %s401
          %v403 = vadd.s32 %v402, %v400
          %vm404 = vcmp.lt.s32.totalorder %v403, 20
          %v405 = vsel %vm404, 1, 0
          %vm406 = vcmp.eq.s32.totalorder %v405, 1
          %v407 = vsel %vm406, %v391, -inf
          %v408 = vsel %vm406, %v392, -inf
          %v409 = vsel %vm406, %v393, -inf
          %v410 = vsel %vm406, %v394, -inf
          %v411 = vsel %vm406, %v395, -inf
          %v412 = vsel %vm406, %v396, -inf
          %v413 = vsel %vm406, %v397, -inf
          %v414 = vsel %vm406, %v398, -inf
          %v415 = vld [vmem:[#allocation2] sm:$0xff]
          %vm416 = vcmask 523264
          %v417 = vsel %vm416, %v407, -inf
          %v418 = vrot.slane %v417, 4
          %v419 = vmax.f32 %v417, %v418
          %v420 = vrot.slane %v419, 2
          %v421 = vmax.f32 %v419, %v420
          %v422 = vrot.slane %v421, 1
          %v423 = vmax.f32 %v421, %v422
          %v424 = vsel %vm416, %v408, -inf
          %v425 = vrot.slane %v424, 4
          %v426 = vmax.f32 %v424, %v425
          %v427 = vrot.slane %v426, 2
          %v428 = vmax.f32 %v426, %v427
          %v429 = vrot.slane %v428, 1
          %v430 = vmax.f32 %v428, %v429
          %v431 = vsel %vm416, %v409, -inf
          %v432 = vrot.slane %v431, 4
          %v433 = vmax.f32 %v431, %v432
          %v434 = vrot.slane %v433, 2
          %v435 = vmax.f32 %v433, %v434
          %v436 = vrot.slane %v435, 1
          %v437 = vmax.f32 %v435, %v436
          %v438 = vsel %vm416, %v410, -inf
          %v439 = vrot.slane %v438, 4
          %v440 = vmax.f32 %v438, %v439
          %v441 = vrot.slane %v440, 2
          %v442 = vmax.f32 %v440, %v441
          %v443 = vrot.slane %v442, 1
          %v444 = vmax.f32 %v442, %v443
          %v445 = vsel %vm416, %v411, -inf
          %v446 = vrot.slane %v445, 4
          %v447 = vmax.f32 %v445, %v446
          %v448 = vrot.slane %v447, 2
          %v449 = vmax.f32 %v447, %v448
          %v450 = vrot.slane %v449, 1
          %v451 = vmax.f32 %v449, %v450
          %v452 = vsel %vm416, %v412, -inf
          %v453 = vrot.slane %v452, 4
          %v454 = vmax.f32 %v452, %v453
          %v455 = vrot.slane %v454, 2
          %v456 = vmax.f32 %v454, %v455
          %v457 = vrot.slane %v456, 1
          %v458 = vmax.f32 %v456, %v457
          %v459 = vsel %vm416, %v413, -inf
          %v460 = vrot.slane %v459, 4
          %v461 = vmax.f32 %v459, %v460
          %v462 = vrot.slane %v461, 2
          %v463 = vmax.f32 %v461, %v462
          %v464 = vrot.slane %v463, 1
          %v465 = vmax.f32 %v463, %v464
          %v466 = vsel %vm416, %v414, -inf
          %v467 = vrot.slane %v466, 4
          %v468 = vmax.f32 %v466, %v467
          %v469 = vrot.slane %v468, 2
          %v470 = vmax.f32 %v468, %v469
          %v471 = vrot.slane %v470, 1
          %v472 = vmax.f32 %v470, %v471
          %vm481 = vcmask 1041409
          %v482 = vsel %vm481, %v430, %v423
          %vm483 = vcmask 1042434
          %v484 = vsel %vm483, %v437, %v482
          %vm485 = vcmask 1043459
          %v486 = vsel %vm485, %v444, %v484
          %vm487 = vcmask 1044484
          %v488 = vsel %vm487, %v451, %v486
          %vm489 = vcmask 1045509
          %v490 = vsel %vm489, %v458, %v488
          %vm491 = vcmask 1046534
          %v492 = vsel %vm491, %v465, %v490
          %vm493 = vcmask 1047559
          %v494 = vsel %vm493, %v472, %v492
          %v496 = vmax.f32 %v415, %v494
          %497 = vst.msk [vmem:[#allocation2] sm:$0xff] %vm416, %v496
        $region102: #{tpu_custom_call.1} parent=89 // pred_fallthru
          _
        %p498 = scmp.ne.s32.totalorder %s21, 2
        // Predicated region
        $region103: #{tpu_custom_call.1} parent=89 // pred_check
          %p499 = pneg %p498
        $region104: #{tpu_custom_call.1} parent=89 // pred_check_branch
          %501 = sbr.rel (%p499) target = $region106
        $region105: #{tpu_custom_call.1} parent=89 // pred_region
          %v502 = vld [vmem:[%s353] sm:$0xff]
          %v503 = vld [vmem:[%s353 + $0x8] sm:$0xff]
          %v504 = vld [vmem:[%s353 + $0x10] sm:$0xff]
          %v505 = vld [vmem:[%s353 + $0x18] sm:$0xff]
          %v506 = vld [vmem:[%s353 + $0x20] sm:$0xff]
          %v507 = vld [vmem:[%s353 + $0x28] sm:$0xff]
          %v508 = vld [vmem:[%s353 + $0x30] sm:$0xff]
          %v509 = vld [vmem:[%s353 + $0x38] sm:$0xff]
          %v510 = vld [vmem:[#allocation2] sm:$0xff]
          %vm511 = vcmask 523264
          %v512 = vsel %vm511, %v502, -inf
          %v513 = vrot.slane %v512, 4
          %v514 = vmax.f32 %v512, %v513
          %v515 = vrot.slane %v514, 2
          %v516 = vmax.f32 %v514, %v515
          %v517 = vrot.slane %v516, 1
          %v518 = vmax.f32 %v516, %v517
          %v519 = vsel %vm511, %v503, -inf
          %v520 = vrot.slane %v519, 4
          %v521 = vmax.f32 %v519, %v520
          %v522 = vrot.slane %v521, 2
          %v523 = vmax.f32 %v521, %v522
          %v524 = vrot.slane %v523, 1
          %v525 = vmax.f32 %v523, %v524
          %v526 = vsel %vm511, %v504, -inf
          %v527 = vrot.slane %v526, 4
          %v528 = vmax.f32 %v526, %v527
          %v529 = vrot.slane %v528, 2
          %v530 = vmax.f32 %v528, %v529
          %v531 = vrot.slane %v530, 1
          %v532 = vmax.f32 %v530, %v531
          %v533 = vsel %vm511, %v505, -inf
          %v534 = vrot.slane %v533, 4
          %v535 = vmax.f32 %v533, %v534
          %v536 = vrot.slane %v535, 2
          %v537 = vmax.f32 %v535, %v536
          %v538 = vrot.slane %v537, 1
          %v539 = vmax.f32 %v537, %v538
          %v540 = vsel %vm511, %v506, -inf
          %v541 = vrot.slane %v540, 4
          %v542 = vmax.f32 %v540, %v541
          %v543 = vrot.slane %v542, 2
          %v544 = vmax.f32 %v542, %v543
          %v545 = vrot.slane %v544, 1
          %v546 = vmax.f32 %v544, %v545
          %v547 = vsel %vm511, %v507, -inf
          %v548 = vrot.slane %v547, 4
          %v549 = vmax.f32 %v547, %v548
          %v550 = vrot.slane %v549, 2
          %v551 = vmax.f32 %v549, %v550
          %v552 = vrot.slane %v551, 1
          %v553 = vmax.f32 %v551, %v552
          %v554 = vsel %vm511, %v508, -inf
          %v555 = vrot.slane %v554, 4
          %v556 = vmax.f32 %v554, %v555
          %v557 = vrot.slane %v556, 2
          %v558 = vmax.f32 %v556, %v557
          %v559 = vrot.slane %v558, 1
          %v560 = vmax.f32 %v558, %v559
          %v561 = vsel %vm511, %v509, -inf
          %v562 = vrot.slane %v561, 4
          %v563 = vmax.f32 %v561, %v562
          %v564 = vrot.slane %v563, 2
          %v565 = vmax.f32 %v563, %v564
          %v566 = vrot.slane %v565, 1
          %v567 = vmax.f32 %v565, %v566
          %vm576 = vcmask 1041409
          %v577 = vsel %vm576, %v525, %v518
          %vm578 = vcmask 1042434
          %v579 = vsel %vm578, %v532, %v577
          %vm580 = vcmask 1043459
          %v581 = vsel %vm580, %v539, %v579
          %vm582 = vcmask 1044484
          %v583 = vsel %vm582, %v546, %v581
          %vm584 = vcmask 1045509
          %v585 = vsel %vm584, %v553, %v583
          %vm586 = vcmask 1046534
          %v587 = vsel %vm586, %v560, %v585
          %vm588 = vcmask 1047559
          %v589 = vsel %vm588, %v567, %v587
          %v591 = vmax.f32 %v510, %v589
          %592 = vst.msk [vmem:[#allocation2] sm:$0xff] %vm511, %v591
        $region106: #{tpu_custom_call.1} parent=89 // pred_fallthru
          _
        // Predicated region
        $region107: #{tpu_custom_call.1} parent=89 // pred_check
          %p593 = pneg %p387
        $region108: #{tpu_custom_call.1} parent=89 // pred_check_branch
          %595 = sbr.rel (%p593) target = $region110
        $region109: #{tpu_custom_call.1} parent=89 // pred_region
          %v596 = vld [vmem:[#allocation2] sm:$0xff]
          %v597 = vld [vmem:[%s1] sm:$0xff]
          %v598 = vld [vmem:[%s1 + $0x8] sm:$0xff]
          %v599 = vld [vmem:[%s1 + $0x10] sm:$0xff]
          %v600 = vld [vmem:[%s1 + $0x18] sm:$0xff]
          %v601 = vld [vmem:[%s1 + $0x20] sm:$0xff]
          %v602 = vld [vmem:[%s1 + $0x28] sm:$0xff]
          %v603 = vld [vmem:[%s1 + $0x30] sm:$0xff]
          %v604 = vld [vmem:[%s1 + $0x38] sm:$0xff]
          %vm605 = vcmask 523264
          %v607 = vsel %vm605, %v596, 0
          %609 = vmatprep.subr.mxu0 0.0
          %610 = vmatpush1.msra.mxu0 %v597
          %611 = vmatprep.subr.mxu0 0.0
          %612 = vmatpush1.msra.mxu0 %v598
          %613 = vmatprep.subr.mxu0 0.0
          %614 = vmatpush1.msra.mxu0 %v599
          %615 = vmatprep.subr.mxu0 0.0
          %616 = vmatpush1.msra.mxu0 %v600
          %617 = vmatprep.subr.mxu0 0.0
          %618 = vmatpush1.msra.mxu0 %v601
          %619 = vmatprep.subr.mxu0 0.0
          %620 = vmatpush1.msra.mxu0 %v602
          %621 = vmatprep.subr.mxu0 0.0
          %622 = vmatpush1.msra.mxu0 %v603
          %623 = vmatprep.subr.mxu0 0.0
          %624 = vmatpush1.msra.mxu0 %v604
          %625 = vmatprep.subr.mxu0 0.0
          %626 = vmatpush1.msra.mxu0 0.0
          %627 = vmatprep.subr.mxu0 0.0
          %628 = vmatpush1.msra.mxu0 0.0
          %629 = vmatprep.subr.mxu0 0.0
          %630 = vmatpush1.msra.mxu0 0.0
          %631 = vmatprep.subr.mxu0 0.0
          %632 = vmatpush1.msra.mxu0 0.0
          %633 = vmatprep.subr.mxu0 0.0
          %634 = vmatpush1.msra.mxu0 0.0
          %635 = vmatprep.subr.mxu0 0.0
          %636 = vmatpush1.msra.mxu0 0.0
          %637 = vmatprep.subr.mxu0 0.0
          %638 = vmatpush1.msra.mxu0 0.0
          %639 = vmatprep.subr.mxu0 0.0
          %640 = vmatpush1.msra.mxu0 0.0
          %641 = vmatprep.subr.mxu0 0.0
          %642 = vmatpush1.msra.mxu0 0.0
          %643 = vmatprep.subr.mxu0 0.0
          %644 = vmatpush1.msra.mxu0 0.0
          %645 = vmatprep.subr.mxu0 0.0
          %646 = vmatpush1.msra.mxu0 0.0
          %647 = vmatprep.subr.mxu0 0.0
          %648 = vmatpush1.msra.mxu0 0.0
          %649 = vmatprep.subr.mxu0 0.0
          %650 = vmatpush1.msra.mxu0 0.0
          %651 = vmatprep.subr.mxu0 0.0
          %652 = vmatpush1.msra.mxu0 0.0
          %653 = vmatprep.subr.mxu0 0.0
          %654 = vmatpush1.msra.mxu0 0.0
          %655 = vmatprep.subr.mxu0 0.0
          %656 = vmatpush1.msra.mxu0 0.0
          %657 = vmatprep.subr.mxu0 0.0
          %658 = vmatpush1.msra.mxu0 0.0
          %659 = vmatprep.subr.mxu0 0.0
          %660 = vmatpush1.msra.mxu0 0.0
          %661 = vmatprep.subr.mxu0 0.0
          %662 = vmatpush1.msra.mxu0 0.0
          %663 = vmatprep.subr.mxu0 0.0
          %664 = vmatpush1.msra.mxu0 0.0
          %665 = vmatprep.subr.mxu0 0.0
          %666 = vmatpush1.msra.mxu0 0.0
          %667 = vmatprep.subr.mxu0 0.0
          %668 = vmatpush1.msra.mxu0 0.0
          %669 = vmatprep.subr.mxu0 0.0
          %670 = vmatpush1.msra.mxu0 0.0
          %671 = vmatprep.subr.mxu0 0.0
          %672 = vmatpush1.msra.mxu0 0.0
          %673 = vmatprep.mubr.f32.mxu0 0.0
          %674 = vmatmul.mubr.f32.gmra.mrb[0].mxu0 %v607
          %v675 = vpop.f32.mrb[0].mxu0
          %v676 = vadd.f32 0.0, %v675
          %v677 = vpop.f32.mrb[0].mxu0
          %678 = vdwg.mxu0
          %v679 = vld [vmem:[%s2] sm:$0x3]
          %vm680 = vcmask 261120
          %v681 = vsel %vm680, %v676, 0.0
          %v682 = vrot.slane %v681, 4
          %v683 = vadd.f32 %v681, %v682
          %v684 = vrot.slane %v683, 2
          %v685 = vadd.f32 %v683, %v684
          %v686 = vrot.slane %v685, 1
          %v687 = vadd.f32 %v685, %v686
          %v688 = vrcp.pop 8.0
          %v689 = vmul.f32 %v687, %v688
          %v690 = vsub.f32 %v676, %v689
          %v691 = vmul.f32 %v690, %v690
          %v692 = vsel %vm680, %v691, 0.0
          %v693 = vrot.slane %v692, 4
          %v694 = vadd.f32 %v692, %v693
          %v695 = vrot.slane %v694, 2
          %v696 = vadd.f32 %v694, %v695
          %v697 = vrot.slane %v696, 1
          %v698 = vadd.f32 %v696, %v697
          %v699 = vmul.f32 %v698, %v688
          %v700 = vadd.f32 %v699, 1e-05
          %v701 = vrsqrt.pop %v700
          %v702 = vmul.f32 %v690, %v701
          %v703 = vlaneseq
          %v704 = vshrl.u32 %v703, 7
          %v705 = vsub.s32 0, %v704
          %v706 = vrot.slane %v679, %v705
          %v707 = vmul.f32 %v702, %v706
          %v708 = vlaneseq
          %v709 = vshrl.u32 %v708, 7
          %v710 = vsub.s32 1, %v709
          %v711 = vrot.slane %v679, %v710
          %v712 = vadd.f32 %v707, %v711
          %v713 = vmax.f32 %v712, 0.0
          %v714 = vld [vmem:[%s3] sm:$0xff]
          %v715 = vld [vmem:[%s3 + $0x8] sm:$0xff]
          %v716 = vld [vmem:[%s3 + $0x10] sm:$0xff]
          %v717 = vld [vmem:[%s3 + $0x18] sm:$0xff]
          %v719 = vsel %vm680, %v713, 0
          %721 = vmatprep.subr.mxu0 0.0
          %722 = vmatpush1.msra.mxu0 %v714
          %723 = vmatprep.subr.mxu0 0.0
          %724 = vmatpush1.msra.mxu0 %v715
          %725 = vmatprep.subr.mxu0 0.0
          %726 = vmatpush1.msra.mxu0 %v716
          %727 = vmatprep.subr.mxu0 0.0
          %728 = vmatpush1.msra.mxu0 %v717
          %729 = vmatprep.subr.mxu0 0.0
          %730 = vmatpush1.msra.mxu0 0.0
          %731 = vmatprep.subr.mxu0 0.0
          %732 = vmatpush1.msra.mxu0 0.0
          %733 = vmatprep.subr.mxu0 0.0
          %734 = vmatpush1.msra.mxu0 0.0
          %735 = vmatprep.subr.mxu0 0.0
          %736 = vmatpush1.msra.mxu0 0.0
          %737 = vmatprep.subr.mxu0 0.0
          %738 = vmatpush1.msra.mxu0 0.0
          %739 = vmatprep.subr.mxu0 0.0
          %740 = vmatpush1.msra.mxu0 0.0
          %741 = vmatprep.subr.mxu0 0.0
          %742 = vmatpush1.msra.mxu0 0.0
          %743 = vmatprep.subr.mxu0 0.0
          %744 = vmatpush1.msra.mxu0 0.0
          %745 = vmatprep.subr.mxu0 0.0
          %746 = vmatpush1.msra.mxu0 0.0
          %747 = vmatprep.subr.mxu0 0.0
          %748 = vmatpush1.msra.mxu0 0.0
          %749 = vmatprep.subr.mxu0 0.0
          %750 = vmatpush1.msra.mxu0 0.0
          %751 = vmatprep.subr.mxu0 0.0
          %752 = vmatpush1.msra.mxu0 0.0
          %753 = vmatprep.subr.mxu0 0.0
          %754 = vmatpush1.msra.mxu0 0.0
          %755 = vmatprep.subr.mxu0 0.0
          %756 = vmatpush1.msra.mxu0 0.0
          %757 = vmatprep.subr.mxu0 0.0
          %758 = vmatpush1.msra.mxu0 0.0
          %759 = vmatprep.subr.mxu0 0.0
          %760 = vmatpush1.msra.mxu0 0.0
          %761 = vmatprep.subr.mxu0 0.0
          %762 = vmatpush1.msra.mxu0 0.0
          %763 = vmatprep.subr.mxu0 0.0
          %764 = vmatpush1.msra.mxu0 0.0
          %765 = vmatprep.subr.mxu0 0.0
          %766 = vmatpush1.msra.mxu0 0.0
          %767 = vmatprep.subr.mxu0 0.0
          %768 = vmatpush1.msra.mxu0 0.0
          %769 = vmatprep.subr.mxu0 0.0
          %770 = vmatpush1.msra.mxu0 0.0
          %771 = vmatprep.subr.mxu0 0.0
          %772 = vmatpush1.msra.mxu0 0.0
          %773 = vmatprep.subr.mxu0 0.0
          %774 = vmatpush1.msra.mxu0 0.0
          %775 = vmatprep.subr.mxu0 0.0
          %776 = vmatpush1.msra.mxu0 0.0
          %777 = vmatprep.subr.mxu0 0.0
          %778 = vmatpush1.msra.mxu0 0.0
          %779 = vmatprep.subr.mxu0 0.0
          %780 = vmatpush1.msra.mxu0 0.0
          %781 = vmatprep.subr.mxu0 0.0
          %782 = vmatpush1.msra.mxu0 0.0
          %783 = vmatprep.subr.mxu0 0.0
          %784 = vmatpush1.msra.mxu0 0.0
          %785 = vmatprep.mubr.f32.mxu0 0.0
          %786 = vmatmul.mubr.f32.gmra.mrb[0].mxu0 %v719
          %v787 = vpop.f32.mrb[0].mxu0
          %v788 = vadd.f32 0.0, %v787
          %v789 = vpop.f32.mrb[0].mxu0
          %790 = vdwg.mxu0
          %v791 = vld [vmem:[%s4] sm:$0x3]
          %vm792 = vcmask 130048
          %v793 = vsel %vm792, %v788, 0.0
          %v794 = vrot.slane %v793, 4
          %v795 = vadd.f32 %v793, %v794
          %v796 = vrot.slane %v795, 2
          %v797 = vadd.f32 %v795, %v796
          %v798 = vrot.slane %v797, 1
          %v799 = vadd.f32 %v797, %v798
          %v800 = vmul.f32 %v799, %v688
          %v801 = vsub.f32 %v788, %v800
          %v802 = vmul.f32 %v801, %v801
          %v803 = vsel %vm792, %v802, 0.0
          %v804 = vrot.slane %v803, 4
          %v805 = vadd.f32 %v803, %v804
          %v806 = vrot.slane %v805, 2
          %v807 = vadd.f32 %v805, %v806
          %v808 = vrot.slane %v807, 1
          %v809 = vadd.f32 %v807, %v808
          %v810 = vmul.f32 %v809, %v688
          %v811 = vadd.f32 %v810, 1e-05
          %v812 = vrsqrt.pop %v811
          %v813 = vmul.f32 %v801, %v812
          %v814 = vlaneseq
          %v815 = vshrl.u32 %v814, 7
          %v816 = vsub.s32 0, %v815
          %v817 = vrot.slane %v791, %v816
          %v818 = vmul.f32 %v813, %v817
          %v819 = vlaneseq
          %v820 = vshrl.u32 %v819, 7
          %v821 = vsub.s32 1, %v820
          %v822 = vrot.slane %v791, %v821
          %v823 = vadd.f32 %v818, %v822
          %v824 = vmax.f32 %v823, 0.0
          %v825 = vld [vmem:[%s5] sm:$0xff]
          %v826 = vld [vmem:[%s5 + $0x8] sm:$0xff]
          %v828 = vsel %vm792, %v824, 0
          %830 = vmatprep.subr.mxu0 0.0
          %831 = vmatpush1.msra.mxu0 %v825
          %832 = vmatprep.subr.mxu0 0.0
          %833 = vmatpush1.msra.mxu0 %v826
          %834 = vmatprep.subr.mxu0 0.0
          %835 = vmatpush1.msra.mxu0 0.0
          %836 = vmatprep.subr.mxu0 0.0
          %837 = vmatpush1.msra.mxu0 0.0
          %838 = vmatprep.subr.mxu0 0.0
          %839 = vmatpush1.msra.mxu0 0.0
          %840 = vmatprep.subr.mxu0 0.0
          %841 = vmatpush1.msra.mxu0 0.0
          %842 = vmatprep.subr.mxu0 0.0
          %843 = vmatpush1.msra.mxu0 0.0
          %844 = vmatprep.subr.mxu0 0.0
          %845 = vmatpush1.msra.mxu0 0.0
          %846 = vmatprep.subr.mxu0 0.0
          %847 = vmatpush1.msra.mxu0 0.0
          %848 = vmatprep.subr.mxu0 0.0
          %849 = vmatpush1.msra.mxu0 0.0
          %850 = vmatprep.subr.mxu0 0.0
          %851 = vmatpush1.msra.mxu0 0.0
          %852 = vmatprep.subr.mxu0 0.0
          %853 = vmatpush1.msra.mxu0 0.0
          %854 = vmatprep.subr.mxu0 0.0
          %855 = vmatpush1.msra.mxu0 0.0
          %856 = vmatprep.subr.mxu0 0.0
          %857 = vmatpush1.msra.mxu0 0.0
          %858 = vmatprep.subr.mxu0 0.0
          %859 = vmatpush1.msra.mxu0 0.0
          %860 = vmatprep.subr.mxu0 0.0
          %861 = vmatpush1.msra.mxu0 0.0
          %862 = vmatprep.subr.mxu0 0.0
          %863 = vmatpush1.msra.mxu0 0.0
          %864 = vmatprep.subr.mxu0 0.0
          %865 = vmatpush1.msra.mxu0 0.0
          %866 = vmatprep.subr.mxu0 0.0
          %867 = vmatpush1.msra.mxu0 0.0
          %868 = vmatprep.subr.mxu0 0.0
          %869 = vmatpush1.msra.mxu0 0.0
          %870 = vmatprep.subr.mxu0 0.0
          %871 = vmatpush1.msra.mxu0 0.0
          %872 = vmatprep.subr.mxu0 0.0
          %873 = vmatpush1.msra.mxu0 0.0
          %874 = vmatprep.subr.mxu0 0.0
          %875 = vmatpush1.msra.mxu0 0.0
          %876 = vmatprep.subr.mxu0 0.0
          %877 = vmatpush1.msra.mxu0 0.0
          %878 = vmatprep.subr.mxu0 0.0
          %879 = vmatpush1.msra.mxu0 0.0
          %880 = vmatprep.subr.mxu0 0.0
          %881 = vmatpush1.msra.mxu0 0.0
          %882 = vmatprep.subr.mxu0 0.0
          %883 = vmatpush1.msra.mxu0 0.0
          %884 = vmatprep.subr.mxu0 0.0
          %885 = vmatpush1.msra.mxu0 0.0
          %886 = vmatprep.subr.mxu0 0.0
          %887 = vmatpush1.msra.mxu0 0.0
          %888 = vmatprep.subr.mxu0 0.0
          %889 = vmatpush1.msra.mxu0 0.0
          %890 = vmatprep.subr.mxu0 0.0
          %891 = vmatpush1.msra.mxu0 0.0
          %892 = vmatprep.subr.mxu0 0.0
          %893 = vmatpush1.msra.mxu0 0.0
          %894 = vmatprep.mubr.f32.mxu0 0.0
          %895 = vmatmul.mubr.f32.gmra.mrb[0].mxu0 %v828
          %v896 = vpop.f32.mrb[0].mxu0
          %v897 = vadd.f32 0.0, %v896
          %v898 = vpop.f32.mrb[0].mxu0
          %899 = vdwg.mxu0
          %v900 = vld [vmem:[%s6] sm:$0x3]
          %vm901 = vcmask 64512
          %v902 = vsel %vm901, %v897, 0.0
          %v903 = vrot.slane %v902, 4
          %v904 = vadd.f32 %v902, %v903
          %v905 = vrot.slane %v904, 2
          %v906 = vadd.f32 %v904, %v905
          %v907 = vrot.slane %v906, 1
          %v908 = vadd.f32 %v906, %v907
          %v909 = vmul.f32 %v908, %v688
          %v910 = vsub.f32 %v897, %v909
          %v911 = vmul.f32 %v910, %v910
          %v912 = vsel %vm901, %v911, 0.0
          %v913 = vrot.slane %v912, 4
          %v914 = vadd.f32 %v912, %v913
          %v915 = vrot.slane %v914, 2
          %v916 = vadd.f32 %v914, %v915
          %v917 = vrot.slane %v916, 1
          %v918 = vadd.f32 %v916, %v917
          %v919 = vmul.f32 %v918, %v688
          %v920 = vadd.f32 %v919, 1e-05
          %v921 = vrsqrt.pop %v920
          %v922 = vmul.f32 %v910, %v921
          %v923 = vlaneseq
          %v924 = vshrl.u32 %v923, 7
          %v925 = vsub.s32 0, %v924
          %v926 = vrot.slane %v900, %v925
          %v927 = vmul.f32 %v922, %v926
          %v928 = vlaneseq
          %v929 = vshrl.u32 %v928, 7
          %v930 = vsub.s32 1, %v929
          %v931 = vrot.slane %v900, %v930
          %v932 = vadd.f32 %v927, %v931
          %v933 = vmax.f32 %v932, 0.0
          %v934 = vld [vmem:[%s7] sm:$0xff]
          %v935 = vld [vmem:[%s8] sm:$0x1]
          %v937 = vlaneseq
          %v938 = vshrl.u32 %v937, 7
          %v939 = vsub.s32 0, %v938
          %v940 = vrot.slane %v935, %v939
          %v943 = vsel %vm901, %v933, 0
          %945 = vmatprep.subr.mxu0 0.0
          %946 = vmatpush1.msra.mxu0 %v934
          %947 = vmatprep.subr.mxu0 0.0
          %948 = vmatpush1.msra.mxu0 0.0
          %949 = vmatprep.subr.mxu0 0.0
          %950 = vmatpush1.msra.mxu0 0.0
          %951 = vmatprep.subr.mxu0 0.0
          %952 = vmatpush1.msra.mxu0 0.0
          %953 = vmatprep.subr.mxu0 0.0
          %954 = vmatpush1.msra.mxu0 0.0
          %955 = vmatprep.subr.mxu0 0.0
          %956 = vmatpush1.msra.mxu0 0.0
          %957 = vmatprep.subr.mxu0 0.0
          %958 = vmatpush1.msra.mxu0 0.0
          %959 = vmatprep.subr.mxu0 0.0
          %960 = vmatpush1.msra.mxu0 0.0
          %961 = vmatprep.subr.mxu0 0.0
          %962 = vmatpush1.msra.mxu0 0.0
          %963 = vmatprep.subr.mxu0 0.0
          %964 = vmatpush1.msra.mxu0 0.0
          %965 = vmatprep.subr.mxu0 0.0
          %966 = vmatpush1.msra.mxu0 0.0
          %967 = vmatprep.subr.mxu0 0.0
          %968 = vmatpush1.msra.mxu0 0.0
          %969 = vmatprep.subr.mxu0 0.0
          %970 = vmatpush1.msra.mxu0 0.0
          %971 = vmatprep.subr.mxu0 0.0
          %972 = vmatpush1.msra.mxu0 0.0
          %973 = vmatprep.subr.mxu0 0.0
          %974 = vmatpush1.msra.mxu0 0.0
          %975 = vmatprep.subr.mxu0 0.0
          %976 = vmatpush1.msra.mxu0 0.0
          %977 = vmatprep.subr.mxu0 0.0
          %978 = vmatpush1.msra.mxu0 0.0
          %979 = vmatprep.subr.mxu0 0.0
          %980 = vmatpush1.msra.mxu0 0.0
          %981 = vmatprep.subr.mxu0 0.0
          %982 = vmatpush1.msra.mxu0 0.0
          %983 = vmatprep.subr.mxu0 0.0
          %984 = vmatpush1.msra.mxu0 0.0
          %985 = vmatprep.subr.mxu0 0.0
          %986 = vmatpush1.msra.mxu0 0.0
          %987 = vmatprep.subr.mxu0 0.0
          %988 = vmatpush1.msra.mxu0 0.0
          %989 = vmatprep.subr.mxu0 0.0
          %990 = vmatpush1.msra.mxu0 0.0
          %991 = vmatprep.subr.mxu0 0.0
          %992 = vmatpush1.msra.mxu0 0.0
          %993 = vmatprep.subr.mxu0 0.0
          %994 = vmatpush1.msra.mxu0 0.0
          %995 = vmatprep.subr.mxu0 0.0
          %996 = vmatpush1.msra.mxu0 0.0
          %997 = vmatprep.subr.mxu0 0.0
          %998 = vmatpush1.msra.mxu0 0.0
          %999 = vmatprep.subr.mxu0 0.0
          %1000 = vmatpush1.msra.mxu0 0.0
          %1001 = vmatprep.subr.mxu0 0.0
          %1002 = vmatpush1.msra.mxu0 0.0
          %1003 = vmatprep.subr.mxu0 0.0
          %1004 = vmatpush1.msra.mxu0 0.0
          %1005 = vmatprep.subr.mxu0 0.0
          %1006 = vmatpush1.msra.mxu0 0.0
          %1007 = vmatprep.subr.mxu0 0.0
          %1008 = vmatpush1.msra.mxu0 0.0
          %1009 = vmatprep.mubr.f32.mxu0 0.0
          %1010 = vmatmul.mubr.f32.gmra.mrb[0].mxu0 %v943
          %v1011 = vpop.f32.mrb[0].mxu0
          %v1012 = vadd.f32 %v940, %v1011
          %v1013 = vpop.f32.mrb[0].mxu0
          %1014 = vdwg.mxu0
          %v1015 = vlaneseq
          %v1016 = vand.u32 %v1015, 127
          %vm1017 = vcmp.lt.s32.totalorder %v1016, 4
          %v1018 = vmul.f32 %v1012, %v1012
          %v1019 = vsel %vm1017, %v1018, 0.0
          %1020 = vadd.xlane.f32.xlu0 %v1019
          %v1021 = vpop.xlane.xlu0 %1020
          %v1022 = vmax.f32 %v1021, 1e-12
          %v1023 = vrsqrt.pop %v1022
          %v1024 = vmul.f32 %v1012, %v1023
          %v1025 = vsel %vm1017, %v1024, %v1012
          %1026 = vst [vmem:[#allocation4] sm:$0xff] %v1025
        $region110: #{tpu_custom_call.1} parent=89 // pred_fallthru
          _
        // Predicated region
        $region111: #{tpu_custom_call.1} parent=89 // pred_check
          %p1027 = pneg %p228
        $region112: #{tpu_custom_call.1} parent=89 // pred_check_branch
          %1029 = sbr.rel (%p1027) target = $region114
        $region113: #{tpu_custom_call.1} parent=89 // pred_region
          %s1031 = ssub.s32 128, 128
          %1032 = vsyncadd [#allocation5], %s1031
          %s1034 = sshll.u32 [#allocation4], 4
          %s1035 = int_to_ptr.vmem [resolvable:$true] %s1034
          %1037 = dma.vmem_to_hbm [thread:$0]  %s1035, 128, %s9, [#allocation5]
        $region114: #{tpu_custom_call.1} parent=89 // pred_fallthru
          _
        // Predicated region
        $region115: #{tpu_custom_call.1} parent=89 // pred_check
          %p1038 = pneg %p228
        $region116: #{tpu_custom_call.1} parent=89 // pred_check_branch
          %1040 = sbr.rel (%p1038) target = $region118
        $region117: #{tpu_custom_call.1} parent=89 // pred_region
          %1041 = dma.done [#allocation5], 128
        $region118: #{tpu_custom_call.1} parent=89 // pred_fallthru
          _
      $region90: #{tpu_custom_call.1} parent=5 // pred_fallthru
        _
      %p1042 = scmp.le.s32.totalorder 2, %s16
      // Predicated region
      $region119: #{tpu_custom_call.1} parent=5 // pred_check
        %p1043 = pneg %p1042
      $region120: #{tpu_custom_call.1} parent=5 // pred_check_branch
        %1045 = sbr.rel (%p1043) target = $region122
      $region121: #{tpu_custom_call.1} parent=5 // pred_region
        %s1046 = ssub.s32 %s16, 2
      $region122: #{tpu_custom_call.1} parent=5 // pred_fallthru
        _
    $region6: #{tpu_custom_call.1} parent=1 // loop_footer
      %s20 = sadd.s32 1, %s16
    $region7: #{tpu_custom_call.1} parent=1 // loop_footer_branch
      %15 = sbr.rel target = $region3
    $region8: #{tpu_custom_call.1} parent=1 // loop_exit
      _
    %1047 = vsyncpa [#allocation5], 1
    %s1048 = scalar_lea.sflag [#allocation5], 1
    %1049 = vsyncpa %s1048, 1

</llo_original>
